<compile_context>
chip_gen: v7x
topology: tpu7x:2x2x1
jax: 0.10.0
libtpu: 0.0.40
codegen_flags: <defaults>
</compile_context>

<pallas_src>
import jax
import jax.numpy as jnp
from jax import lax
from jax.experimental import pallas as pl
from jax.experimental.pallas import tpu as pltpu


def _domain_embed_kernel(x_ref, wkv_ref, bkv_ref, q_ref, o_ref, *, num_heads, head_dim):
    # Per grid point b:
    #   x_ref   : (N, C)      tokens for batch b
    #   wkv_ref : (C, 2C)     combined kv projection weight (resident)
    #   bkv_ref : (1, 2C)     combined kv projection bias   (resident)
    #   q_ref   : (H, Q, d)   learned domain queries        (resident)
    #   o_ref   : (Q, C)      lane-dense output tile for batch b
    H, d = num_heads, head_dim
    C = H * d

    # One lane-dense kv projection matmul per batch (MXU, f32 accumulate).
    kv = jnp.dot(x_ref[...], wkv_ref[...], preferred_element_type=jnp.float32)
    kv = kv + bkv_ref[...].astype(jnp.float32)                     # (N, 2C)

    outs = []
    for h in range(H):                                             # static unroll
        k_h = kv[:, h * d:(h + 1) * d]                             # (N, d)
        v_h = kv[:, C + h * d:C + (h + 1) * d]                     # (N, d)
        q_h = q_ref[h]                                             # (Q, d)

        # attn = q @ k^T  (contract head_dim of both operands)
        attn = lax.dot_general(
            q_h, k_h, (((1,), (1,)), ((), ())),
            preferred_element_type=jnp.float32,
        )                                                          # (Q, N)

        # numerically stable softmax over keys; divide on the EUP slot
        attn = attn - jnp.max(attn, axis=-1, keepdims=True)
        p = jnp.exp(attn)
        p = p * pl.reciprocal(jnp.sum(p, axis=-1, keepdims=True), approx=True)

        outs.append(jnp.dot(p, v_h, preferred_element_type=jnp.float32))  # (Q, d)

    # Single unmasked lane-dense store of the full (Q, C) tile.
    o_ref[...] = jnp.concatenate(outs, axis=-1).astype(o_ref.dtype)


def domain_embedding(x, wkv, bkv, domain_query, *, num_heads, query_size):
    """Pallas forward for DomainEmbeding.

    x:            (B, N, C)
    wkv:          (C, 2*C)  combined kv projection ('x @ W + b' layout)
    bkv:          (2*C,)
    domain_query: (num_heads, query_size, C // num_heads)
    returns:      (B, query_size, C)
    """
    B, N, C = x.shape
    H, Q = num_heads, query_size
    d = C // H
    bkv2d = bkv.reshape(1, 2 * C)   # trivial reshape, no transpose / HBM copy

    import functools
    kernel = functools.partial(_domain_embed_kernel, num_heads=H, head_dim=d)

    out = pl.pallas_call(
        kernel,
        out_shape=jax.ShapeDtypeStruct((B, Q, C), x.dtype),
        grid=(B,),
        in_specs=[
            pl.BlockSpec((None, N, C), lambda b: (b, 0, 0)),   # x: streamed per batch
            pl.BlockSpec((C, 2 * C), lambda b: (0, 0)),        # wkv: resident
            pl.BlockSpec((1, 2 * C), lambda b: (0, 0)),        # bkv: resident
            pl.BlockSpec((H, Q, d), lambda b: (0, 0, 0)),      # domain_query: resident
        ],
        out_specs=pl.BlockSpec((None, Q, C), lambda b: (b, 0, 0)),
        compiler_params=pltpu.CompilerParams(
            dimension_semantics=("parallel",),
            vmem_limit_bytes=32 * 1024 * 1024,
        ),
    )(x, wkv, bkv2d, domain_query)
    return out


def ref_forward(x, wkv, bkv, domain_query, num_heads, query_size):
    """Pure-JAX reference matching the PyTorch forward semantics."""
    B, N, C = x.shape
    H, Q = num_heads, query_size
    d = C // H
    kv = x @ wkv + bkv                                  # (B, N, 2C)
    kv = kv.reshape(B, N, 2, H, d).transpose(2, 0, 3, 1, 4)
    k, v = kv[0], kv[1]                                 # (B, H, N, d)
    attn = jnp.einsum("hqd,bhnd->bhqn", domain_query, k)
    attn = jax.nn.softmax(attn, axis=-1)
    out = jnp.einsum("bhqn,bhnd->bhqd", attn, v)        # (B, H, Q, d)
    return out.transpose(0, 2, 1, 3).reshape(B, Q, C)


if __name__ == "__main__":
    B, N = 2, 8
    dim, num_heads, query_size = 32, 8, 4
    d = dim // num_heads

    key = jax.random.PRNGKey(0)
    kx, kw, kb, kq = jax.random.split(key, 4)

    x = jax.random.normal(kx, (B, N, dim), dtype=jnp.float32)
    wkv = jax.random.normal(kw, (dim, 2 * dim), dtype=jnp.float32) * 0.1
    bkv = jax.random.normal(kb, (2 * dim,), dtype=jnp.float32) * 0.1
    domain_query = jax.random.normal(kq, (num_heads, query_size, d), dtype=jnp.float32)

    out = domain_embedding(
        x, wkv, bkv, domain_query, num_heads=num_heads, query_size=query_size
    )
    out = jax.block_until_ready(out)

    ref = ref_forward(x, wkv, bkv, domain_query, num_heads, query_size)
    assert out.shape == (B, query_size, dim), out.shape
    # Slightly loose tolerance: softmax denom uses the EUP approx reciprocal.
    assert jnp.allclose(out, ref, atol=2e-3, rtol=2e-3), "mismatch vs reference"

    print("KERNEL_OK")
</pallas_src>

<mosaic_0001>
module attributes {stable_mosaic.version = 11 : i64} {
  func.func @_domain_embed_kernel(%arg0: i32, %arg1: memref<1x8x32xf32, #tpu.memory_space<vmem>>, %arg2: memref<32x64xf32, #tpu.memory_space<vmem>>, %arg3: memref<1x64xf32, #tpu.memory_space<vmem>>, %arg4: memref<8x4x4xf32, #tpu.memory_space<vmem>>, %arg5: memref<1x4x32xf32, #tpu.memory_space<vmem>>) attributes {dimension_semantics = [#tpu.dimension_semantics<parallel>], iteration_bounds = array<i64: 2>, scalar_prefetch = 0 : i64, scratch_operands = 0 : i64, tpu.core_type = #tpu.core_type<tc>, window_params = [{transform_indices = @transform_0, window_bounds = array<i64: 1, 8, 32>}, {pipeline_mode = #tpu.pipeline_mode<synchronous>, transform_indices = @transform_1, window_bounds = array<i64: 32, 64>}, {pipeline_mode = #tpu.pipeline_mode<synchronous>, transform_indices = @transform_2, window_bounds = array<i64: 1, 64>}, {pipeline_mode = #tpu.pipeline_mode<synchronous>, transform_indices = @transform_3, window_bounds = array<i64: 8, 4, 4>}, {transform_indices = @transform_4, window_bounds = array<i64: 1, 4, 32>}]} {
    %c0 = arith.constant 0 : index
    %c0_0 = arith.constant 0 : index
    %c0_1 = arith.constant 0 : index
    %0 = vector.load %arg1[%c0, %c0_0, %c0_1] : memref<1x8x32xf32, #tpu.memory_space<vmem>>, vector<1x8x32xf32>
    %1 = vector.shape_cast %0 : vector<1x8x32xf32> to vector<8x32xf32>
    %c0_2 = arith.constant 0 : index
    %c0_3 = arith.constant 0 : index
    %2 = vector.load %arg2[%c0_2, %c0_3] : memref<32x64xf32, #tpu.memory_space<vmem>>, vector<32x64xf32>
    %cst = arith.constant dense<0.000000e+00> : vector<8x64xf32>
    %3 = tpu.matmul %1, %2, %cst {dimension_numbers = #tpu.dot_dimension_numbers<[1], [0], [0], [1], [0, 0, 1, 1], [], []>} : vector<8x32xf32>, vector<32x64xf32>, vector<8x64xf32> -> vector<8x64xf32>
    %c0_4 = arith.constant 0 : index
    %c0_5 = arith.constant 0 : index
    %4 = vector.load %arg3[%c0_4, %c0_5] : memref<1x64xf32, #tpu.memory_space<vmem>>, vector<1x64xf32>
    %5 = vector.broadcast %4 : vector<1x64xf32> to vector<8x64xf32>
    %6 = arith.addf %3, %5 : vector<8x64xf32>
    %7 = vector.extract_strided_slice %6 {offsets = [0, 0], sizes = [8, 4], strides = [1, 1]} : vector<8x64xf32> to vector<8x4xf32>
    %8 = vector.extract_strided_slice %6 {offsets = [0, 32], sizes = [8, 4], strides = [1, 1]} : vector<8x64xf32> to vector<8x4xf32>
    %c0_6 = arith.constant 0 : index
    %c0_7 = arith.constant 0 : index
    %c0_8 = arith.constant 0 : index
    %9 = vector.load %arg4[%c0_6, %c0_7, %c0_8] : memref<8x4x4xf32, #tpu.memory_space<vmem>>, vector<1x4x4xf32>
    %10 = vector.shape_cast %9 : vector<1x4x4xf32> to vector<4x4xf32>
    %cst_9 = arith.constant dense<0.000000e+00> : vector<4x8xf32>
    %11 = tpu.matmul %10, %7, %cst_9 {dimension_numbers = #tpu.dot_dimension_numbers<[1], [1], [0], [0], [0, 0, 1, 0], [], []>} : vector<4x4xf32>, vector<8x4xf32>, vector<4x8xf32> -> vector<4x8xf32>
    %cst_10 = arith.constant dense<0xFF800000> : vector<4xf32>
    %12 = vector.multi_reduction <maximumf>, %11, %cst_10 [1] : vector<4x8xf32> to vector<4xf32>
    %13 = vector.shape_cast %12 : vector<4xf32> to vector<4x1xf32>
    %14 = vector.broadcast %13 : vector<4x1xf32> to vector<4x8xf32>
    %15 = arith.subf %11, %14 : vector<4x8xf32>
    %16 = math.exp %15 : vector<4x8xf32>
    %cst_11 = arith.constant dense<0.000000e+00> : vector<4xf32>
    %17 = vector.multi_reduction <add>, %16, %cst_11 [1] : vector<4x8xf32> to vector<4xf32>
    %18 = vector.shape_cast %17 : vector<4xf32> to vector<4x1xf32>
    %19 = tpu.reciprocal %18 {approx = true} : vector<4x1xf32> -> vector<4x1xf32>
    %20 = vector.broadcast %19 : vector<4x1xf32> to vector<4x8xf32>
    %21 = arith.mulf %16, %20 : vector<4x8xf32>
    %cst_12 = arith.constant dense<0.000000e+00> : vector<4x4xf32>
    %22 = tpu.matmul %21, %8, %cst_12 {dimension_numbers = #tpu.dot_dimension_numbers<[1], [0], [0], [1], [0, 0, 1, 1], [], []>} : vector<4x8xf32>, vector<8x4xf32>, vector<4x4xf32> -> vector<4x4xf32>
    %23 = vector.extract_strided_slice %6 {offsets = [0, 4], sizes = [8, 4], strides = [1, 1]} : vector<8x64xf32> to vector<8x4xf32>
    %24 = vector.extract_strided_slice %6 {offsets = [0, 36], sizes = [8, 4], strides = [1, 1]} : vector<8x64xf32> to vector<8x4xf32>
    %c1 = arith.constant 1 : index
    %c0_13 = arith.constant 0 : index
    %c0_14 = arith.constant 0 : index
    %25 = vector.load %arg4[%c1, %c0_13, %c0_14] : memref<8x4x4xf32, #tpu.memory_space<vmem>>, vector<1x4x4xf32>
    %26 = vector.shape_cast %25 : vector<1x4x4xf32> to vector<4x4xf32>
    %cst_15 = arith.constant dense<0.000000e+00> : vector<4x8xf32>
    %27 = tpu.matmul %26, %23, %cst_15 {dimension_numbers = #tpu.dot_dimension_numbers<[1], [1], [0], [0], [0, 0, 1, 0], [], []>} : vector<4x4xf32>, vector<8x4xf32>, vector<4x8xf32> -> vector<4x8xf32>
    %cst_16 = arith.constant dense<0xFF800000> : vector<4xf32>
    %28 = vector.multi_reduction <maximumf>, %27, %cst_16 [1] : vector<4x8xf32> to vector<4xf32>
    %29 = vector.shape_cast %28 : vector<4xf32> to vector<4x1xf32>
    %30 = vector.broadcast %29 : vector<4x1xf32> to vector<4x8xf32>
    %31 = arith.subf %27, %30 : vector<4x8xf32>
    %32 = math.exp %31 : vector<4x8xf32>
    %cst_17 = arith.constant dense<0.000000e+00> : vector<4xf32>
    %33 = vector.multi_reduction <add>, %32, %cst_17 [1] : vector<4x8xf32> to vector<4xf32>
    %34 = vector.shape_cast %33 : vector<4xf32> to vector<4x1xf32>
    %35 = tpu.reciprocal %34 {approx = true} : vector<4x1xf32> -> vector<4x1xf32>
    %36 = vector.broadcast %35 : vector<4x1xf32> to vector<4x8xf32>
    %37 = arith.mulf %32, %36 : vector<4x8xf32>
    %cst_18 = arith.constant dense<0.000000e+00> : vector<4x4xf32>
    %38 = tpu.matmul %37, %24, %cst_18 {dimension_numbers = #tpu.dot_dimension_numbers<[1], [0], [0], [1], [0, 0, 1, 1], [], []>} : vector<4x8xf32>, vector<8x4xf32>, vector<4x4xf32> -> vector<4x4xf32>
    %39 = vector.extract_strided_slice %6 {offsets = [0, 8], sizes = [8, 4], strides = [1, 1]} : vector<8x64xf32> to vector<8x4xf32>
    %40 = vector.extract_strided_slice %6 {offsets = [0, 40], sizes = [8, 4], strides = [1, 1]} : vector<8x64xf32> to vector<8x4xf32>
    %c2 = arith.constant 2 : index
    %c0_19 = arith.constant 0 : index
    %c0_20 = arith.constant 0 : index
    %41 = vector.load %arg4[%c2, %c0_19, %c0_20] : memref<8x4x4xf32, #tpu.memory_space<vmem>>, vector<1x4x4xf32>
    %42 = vector.shape_cast %41 : vector<1x4x4xf32> to vector<4x4xf32>
    %cst_21 = arith.constant dense<0.000000e+00> : vector<4x8xf32>
    %43 = tpu.matmul %42, %39, %cst_21 {dimension_numbers = #tpu.dot_dimension_numbers<[1], [1], [0], [0], [0, 0, 1, 0], [], []>} : vector<4x4xf32>, vector<8x4xf32>, vector<4x8xf32> -> vector<4x8xf32>
    %cst_22 = arith.constant dense<0xFF800000> : vector<4xf32>
    %44 = vector.multi_reduction <maximumf>, %43, %cst_22 [1] : vector<4x8xf32> to vector<4xf32>
    %45 = vector.shape_cast %44 : vector<4xf32> to vector<4x1xf32>
    %46 = vector.broadcast %45 : vector<4x1xf32> to vector<4x8xf32>
    %47 = arith.subf %43, %46 : vector<4x8xf32>
    %48 = math.exp %47 : vector<4x8xf32>
    %cst_23 = arith.constant dense<0.000000e+00> : vector<4xf32>
    %49 = vector.multi_reduction <add>, %48, %cst_23 [1] : vector<4x8xf32> to vector<4xf32>
    %50 = vector.shape_cast %49 : vector<4xf32> to vector<4x1xf32>
    %51 = tpu.reciprocal %50 {approx = true} : vector<4x1xf32> -> vector<4x1xf32>
    %52 = vector.broadcast %51 : vector<4x1xf32> to vector<4x8xf32>
    %53 = arith.mulf %48, %52 : vector<4x8xf32>
    %cst_24 = arith.constant dense<0.000000e+00> : vector<4x4xf32>
    %54 = tpu.matmul %53, %40, %cst_24 {dimension_numbers = #tpu.dot_dimension_numbers<[1], [0], [0], [1], [0, 0, 1, 1], [], []>} : vector<4x8xf32>, vector<8x4xf32>, vector<4x4xf32> -> vector<4x4xf32>
    %55 = vector.extract_strided_slice %6 {offsets = [0, 12], sizes = [8, 4], strides = [1, 1]} : vector<8x64xf32> to vector<8x4xf32>
    %56 = vector.extract_strided_slice %6 {offsets = [0, 44], sizes = [8, 4], strides = [1, 1]} : vector<8x64xf32> to vector<8x4xf32>
    %c3 = arith.constant 3 : index
    %c0_25 = arith.constant 0 : index
    %c0_26 = arith.constant 0 : index
    %57 = vector.load %arg4[%c3, %c0_25, %c0_26] : memref<8x4x4xf32, #tpu.memory_space<vmem>>, vector<1x4x4xf32>
    %58 = vector.shape_cast %57 : vector<1x4x4xf32> to vector<4x4xf32>
    %cst_27 = arith.constant dense<0.000000e+00> : vector<4x8xf32>
    %59 = tpu.matmul %58, %55, %cst_27 {dimension_numbers = #tpu.dot_dimension_numbers<[1], [1], [0], [0], [0, 0, 1, 0], [], []>} : vector<4x4xf32>, vector<8x4xf32>, vector<4x8xf32> -> vector<4x8xf32>
    %cst_28 = arith.constant dense<0xFF800000> : vector<4xf32>
    %60 = vector.multi_reduction <maximumf>, %59, %cst_28 [1] : vector<4x8xf32> to vector<4xf32>
    %61 = vector.shape_cast %60 : vector<4xf32> to vector<4x1xf32>
    %62 = vector.broadcast %61 : vector<4x1xf32> to vector<4x8xf32>
    %63 = arith.subf %59, %62 : vector<4x8xf32>
    %64 = math.exp %63 : vector<4x8xf32>
    %cst_29 = arith.constant dense<0.000000e+00> : vector<4xf32>
    %65 = vector.multi_reduction <add>, %64, %cst_29 [1] : vector<4x8xf32> to vector<4xf32>
    %66 = vector.shape_cast %65 : vector<4xf32> to vector<4x1xf32>
    %67 = tpu.reciprocal %66 {approx = true} : vector<4x1xf32> -> vector<4x1xf32>
    %68 = vector.broadcast %67 : vector<4x1xf32> to vector<4x8xf32>
    %69 = arith.mulf %64, %68 : vector<4x8xf32>
    %cst_30 = arith.constant dense<0.000000e+00> : vector<4x4xf32>
    %70 = tpu.matmul %69, %56, %cst_30 {dimension_numbers = #tpu.dot_dimension_numbers<[1], [0], [0], [1], [0, 0, 1, 1], [], []>} : vector<4x8xf32>, vector<8x4xf32>, vector<4x4xf32> -> vector<4x4xf32>
    %71 = vector.extract_strided_slice %6 {offsets = [0, 16], sizes = [8, 4], strides = [1, 1]} : vector<8x64xf32> to vector<8x4xf32>
    %72 = vector.extract_strided_slice %6 {offsets = [0, 48], sizes = [8, 4], strides = [1, 1]} : vector<8x64xf32> to vector<8x4xf32>
    %c4 = arith.constant 4 : index
    %c0_31 = arith.constant 0 : index
    %c0_32 = arith.constant 0 : index
    %73 = vector.load %arg4[%c4, %c0_31, %c0_32] : memref<8x4x4xf32, #tpu.memory_space<vmem>>, vector<1x4x4xf32>
    %74 = vector.shape_cast %73 : vector<1x4x4xf32> to vector<4x4xf32>
    %cst_33 = arith.constant dense<0.000000e+00> : vector<4x8xf32>
    %75 = tpu.matmul %74, %71, %cst_33 {dimension_numbers = #tpu.dot_dimension_numbers<[1], [1], [0], [0], [0, 0, 1, 0], [], []>} : vector<4x4xf32>, vector<8x4xf32>, vector<4x8xf32> -> vector<4x8xf32>
    %cst_34 = arith.constant dense<0xFF800000> : vector<4xf32>
    %76 = vector.multi_reduction <maximumf>, %75, %cst_34 [1] : vector<4x8xf32> to vector<4xf32>
    %77 = vector.shape_cast %76 : vector<4xf32> to vector<4x1xf32>
    %78 = vector.broadcast %77 : vector<4x1xf32> to vector<4x8xf32>
    %79 = arith.subf %75, %78 : vector<4x8xf32>
    %80 = math.exp %79 : vector<4x8xf32>
    %cst_35 = arith.constant dense<0.000000e+00> : vector<4xf32>
    %81 = vector.multi_reduction <add>, %80, %cst_35 [1] : vector<4x8xf32> to vector<4xf32>
    %82 = vector.shape_cast %81 : vector<4xf32> to vector<4x1xf32>
    %83 = tpu.reciprocal %82 {approx = true} : vector<4x1xf32> -> vector<4x1xf32>
    %84 = vector.broadcast %83 : vector<4x1xf32> to vector<4x8xf32>
    %85 = arith.mulf %80, %84 : vector<4x8xf32>
    %cst_36 = arith.constant dense<0.000000e+00> : vector<4x4xf32>
    %86 = tpu.matmul %85, %72, %cst_36 {dimension_numbers = #tpu.dot_dimension_numbers<[1], [0], [0], [1], [0, 0, 1, 1], [], []>} : vector<4x8xf32>, vector<8x4xf32>, vector<4x4xf32> -> vector<4x4xf32>
    %87 = vector.extract_strided_slice %6 {offsets = [0, 20], sizes = [8, 4], strides = [1, 1]} : vector<8x64xf32> to vector<8x4xf32>
    %88 = vector.extract_strided_slice %6 {offsets = [0, 52], sizes = [8, 4], strides = [1, 1]} : vector<8x64xf32> to vector<8x4xf32>
    %c5 = arith.constant 5 : index
    %c0_37 = arith.constant 0 : index
    %c0_38 = arith.constant 0 : index
    %89 = vector.load %arg4[%c5, %c0_37, %c0_38] : memref<8x4x4xf32, #tpu.memory_space<vmem>>, vector<1x4x4xf32>
    %90 = vector.shape_cast %89 : vector<1x4x4xf32> to vector<4x4xf32>
    %cst_39 = arith.constant dense<0.000000e+00> : vector<4x8xf32>
    %91 = tpu.matmul %90, %87, %cst_39 {dimension_numbers = #tpu.dot_dimension_numbers<[1], [1], [0], [0], [0, 0, 1, 0], [], []>} : vector<4x4xf32>, vector<8x4xf32>, vector<4x8xf32> -> vector<4x8xf32>
    %cst_40 = arith.constant dense<0xFF800000> : vector<4xf32>
    %92 = vector.multi_reduction <maximumf>, %91, %cst_40 [1] : vector<4x8xf32> to vector<4xf32>
    %93 = vector.shape_cast %92 : vector<4xf32> to vector<4x1xf32>
    %94 = vector.broadcast %93 : vector<4x1xf32> to vector<4x8xf32>
    %95 = arith.subf %91, %94 : vector<4x8xf32>
    %96 = math.exp %95 : vector<4x8xf32>
    %cst_41 = arith.constant dense<0.000000e+00> : vector<4xf32>
    %97 = vector.multi_reduction <add>, %96, %cst_41 [1] : vector<4x8xf32> to vector<4xf32>
    %98 = vector.shape_cast %97 : vector<4xf32> to vector<4x1xf32>
    %99 = tpu.reciprocal %98 {approx = true} : vector<4x1xf32> -> vector<4x1xf32>
    %100 = vector.broadcast %99 : vector<4x1xf32> to vector<4x8xf32>
    %101 = arith.mulf %96, %100 : vector<4x8xf32>
    %cst_42 = arith.constant dense<0.000000e+00> : vector<4x4xf32>
    %102 = tpu.matmul %101, %88, %cst_42 {dimension_numbers = #tpu.dot_dimension_numbers<[1], [0], [0], [1], [0, 0, 1, 1], [], []>} : vector<4x8xf32>, vector<8x4xf32>, vector<4x4xf32> -> vector<4x4xf32>
    %103 = vector.extract_strided_slice %6 {offsets = [0, 24], sizes = [8, 4], strides = [1, 1]} : vector<8x64xf32> to vector<8x4xf32>
    %104 = vector.extract_strided_slice %6 {offsets = [0, 56], sizes = [8, 4], strides = [1, 1]} : vector<8x64xf32> to vector<8x4xf32>
    %c6 = arith.constant 6 : index
    %c0_43 = arith.constant 0 : index
    %c0_44 = arith.constant 0 : index
    %105 = vector.load %arg4[%c6, %c0_43, %c0_44] : memref<8x4x4xf32, #tpu.memory_space<vmem>>, vector<1x4x4xf32>
    %106 = vector.shape_cast %105 : vector<1x4x4xf32> to vector<4x4xf32>
    %cst_45 = arith.constant dense<0.000000e+00> : vector<4x8xf32>
    %107 = tpu.matmul %106, %103, %cst_45 {dimension_numbers = #tpu.dot_dimension_numbers<[1], [1], [0], [0], [0, 0, 1, 0], [], []>} : vector<4x4xf32>, vector<8x4xf32>, vector<4x8xf32> -> vector<4x8xf32>
    %cst_46 = arith.constant dense<0xFF800000> : vector<4xf32>
    %108 = vector.multi_reduction <maximumf>, %107, %cst_46 [1] : vector<4x8xf32> to vector<4xf32>
    %109 = vector.shape_cast %108 : vector<4xf32> to vector<4x1xf32>
    %110 = vector.broadcast %109 : vector<4x1xf32> to vector<4x8xf32>
    %111 = arith.subf %107, %110 : vector<4x8xf32>
    %112 = math.exp %111 : vector<4x8xf32>
    %cst_47 = arith.constant dense<0.000000e+00> : vector<4xf32>
    %113 = vector.multi_reduction <add>, %112, %cst_47 [1] : vector<4x8xf32> to vector<4xf32>
    %114 = vector.shape_cast %113 : vector<4xf32> to vector<4x1xf32>
    %115 = tpu.reciprocal %114 {approx = true} : vector<4x1xf32> -> vector<4x1xf32>
    %116 = vector.broadcast %115 : vector<4x1xf32> to vector<4x8xf32>
    %117 = arith.mulf %112, %116 : vector<4x8xf32>
    %cst_48 = arith.constant dense<0.000000e+00> : vector<4x4xf32>
    %118 = tpu.matmul %117, %104, %cst_48 {dimension_numbers = #tpu.dot_dimension_numbers<[1], [0], [0], [1], [0, 0, 1, 1], [], []>} : vector<4x8xf32>, vector<8x4xf32>, vector<4x4xf32> -> vector<4x4xf32>
    %119 = vector.extract_strided_slice %6 {offsets = [0, 28], sizes = [8, 4], strides = [1, 1]} : vector<8x64xf32> to vector<8x4xf32>
    %120 = vector.extract_strided_slice %6 {offsets = [0, 60], sizes = [8, 4], strides = [1, 1]} : vector<8x64xf32> to vector<8x4xf32>
    %c7 = arith.constant 7 : index
    %c0_49 = arith.constant 0 : index
    %c0_50 = arith.constant 0 : index
    %121 = vector.load %arg4[%c7, %c0_49, %c0_50] : memref<8x4x4xf32, #tpu.memory_space<vmem>>, vector<1x4x4xf32>
    %122 = vector.shape_cast %121 : vector<1x4x4xf32> to vector<4x4xf32>
    %cst_51 = arith.constant dense<0.000000e+00> : vector<4x8xf32>
    %123 = tpu.matmul %122, %119, %cst_51 {dimension_numbers = #tpu.dot_dimension_numbers<[1], [1], [0], [0], [0, 0, 1, 0], [], []>} : vector<4x4xf32>, vector<8x4xf32>, vector<4x8xf32> -> vector<4x8xf32>
    %cst_52 = arith.constant dense<0xFF800000> : vector<4xf32>
    %124 = vector.multi_reduction <maximumf>, %123, %cst_52 [1] : vector<4x8xf32> to vector<4xf32>
    %125 = vector.shape_cast %124 : vector<4xf32> to vector<4x1xf32>
    %126 = vector.broadcast %125 : vector<4x1xf32> to vector<4x8xf32>
    %127 = arith.subf %123, %126 : vector<4x8xf32>
    %128 = math.exp %127 : vector<4x8xf32>
    %cst_53 = arith.constant dense<0.000000e+00> : vector<4xf32>
    %129 = vector.multi_reduction <add>, %128, %cst_53 [1] : vector<4x8xf32> to vector<4xf32>
    %130 = vector.shape_cast %129 : vector<4xf32> to vector<4x1xf32>
    %131 = tpu.reciprocal %130 {approx = true} : vector<4x1xf32> -> vector<4x1xf32>
    %132 = vector.broadcast %131 : vector<4x1xf32> to vector<4x8xf32>
    %133 = arith.mulf %128, %132 : vector<4x8xf32>
    %cst_54 = arith.constant dense<0.000000e+00> : vector<4x4xf32>
    %134 = tpu.matmul %133, %120, %cst_54 {dimension_numbers = #tpu.dot_dimension_numbers<[1], [0], [0], [1], [0, 0, 1, 1], [], []>} : vector<4x8xf32>, vector<8x4xf32>, vector<4x4xf32> -> vector<4x4xf32>
    %135 = tpu.concatenate %22, %38, %54, %70, %86, %102, %118, %134 in 1 : vector<4x4xf32>, vector<4x4xf32>, vector<4x4xf32>, vector<4x4xf32>, vector<4x4xf32>, vector<4x4xf32>, vector<4x4xf32>, vector<4x4xf32> -> vector<4x32xf32>
    %c0_55 = arith.constant 0 : index
    %c0_56 = arith.constant 0 : index
    %c0_57 = arith.constant 0 : index
    %136 = vector.load %arg5[%c0_55, %c0_56, %c0_57] : memref<1x4x32xf32, #tpu.memory_space<vmem>>, vector<1x4x32xf32>
    %137 = vector.shape_cast %136 : vector<1x4x32xf32> to vector<4x32xf32>
    %138 = vector.shape_cast %135 : vector<4x32xf32> to vector<1x4x32xf32>
    tpu.vector_store %arg5[%c0_55, %c0_56, %c0_57], %138 {strides = array<i32>} : memref<1x4x32xf32, #tpu.memory_space<vmem>>, vector<1x4x32xf32>,
    return
  }
  func.func @transform_0(%arg0: i32) -> (i32, i32, i32) {
    %c0_i32 = arith.constant 0 : i32
    %c0_i32_0 = arith.constant 0 : i32
    %c0_i32_1 = arith.constant 0 : i32
    return %arg0, %c0_i32, %c0_i32_0 : i32, i32, i32
  }
  func.func @transform_1(%arg0: i32) -> (i32, i32) {
    %c0_i32 = arith.constant 0 : i32
    %c0_i32_0 = arith.constant 0 : i32
    %c0_i32_1 = arith.constant 0 : i32
    return %c0_i32, %c0_i32_0 : i32, i32
  }
  func.func @transform_2(%arg0: i32) -> (i32, i32) {
    %c0_i32 = arith.constant 0 : i32
    %c0_i32_0 = arith.constant 0 : i32
    %c0_i32_1 = arith.constant 0 : i32
    return %c0_i32, %c0_i32_0 : i32, i32
  }
  func.func @transform_3(%arg0: i32) -> (i32, i32, i32) {
    %c0_i32 = arith.constant 0 : i32
    %c0_i32_0 = arith.constant 0 : i32
    %c0_i32_1 = arith.constant 0 : i32
    %c0_i32_2 = arith.constant 0 : i32
    return %c0_i32, %c0_i32_0, %c0_i32_1 : i32, i32, i32
  }
  func.func @transform_4(%arg0: i32) -> (i32, i32, i32) {
    %c0_i32 = arith.constant 0 : i32
    %c0_i32_0 = arith.constant 0 : i32
    %c0_i32_1 = arith.constant 0 : i32
    return %arg0, %c0_i32, %c0_i32_0 : i32, i32, i32
  }
}

</mosaic_0001>

<llo_original>
// kernel: tpu_custom_call.1
$region0: #{tpu_custom_call.1}
  #allocation0 [shape = 'u32[]', space=smem, size = 0x4, offset = 0x4, fixed_abs, tag = 'smem constant byte address 0x4 - core index']
  #allocation1 [shape = 'u32[144,128]{1,0:T(1,128)}', space=vmem, size = 0x12000, scoped, tag = 'internal scratch']
  %s0 = inlined_call_operand.vmem [shape: f32[2,8,32], index: 0, kind: input, shape index: {}]
  %s1 = inlined_call_operand.vmem [shape: f32[32,64], index: 1, kind: input, shape index: {}]
  %s2 = inlined_call_operand.vmem [shape: f32[1,64], index: 2, kind: input, shape index: {}]
  %s3 = inlined_call_operand.vmem [shape: f32[8,4,4], index: 3, kind: input, shape index: {}]
  %s4 = inlined_call_operand.hbm [shape: f32[2,4,32], index: 4, kind: output, shape index: {}]
  %s5 = sld [smem:[#allocation0]]
  $region49: #{tpu_custom_call.1} parent=0
    _
  %s7 = ssub.s32 1, %s5
  %s8 = scalar_select 0, %s7, %s5
  $region1: #{tpu_custom_call.1} parent=0
    #allocation2 [shape = 'u8[4096]{0}', space=vmem, size = 0x1000, scoped, tag = 'output window, operand 0']
    #allocation3 [shape = 's32[2]{0}', space=sflag, size = 0x8, scoped, tag = 'scoped memory for tpu_custom_call.1']
    %9 = vsyncpa [#allocation3], 0
    %s10 = scalar_lea.sflag [#allocation3], 1
    %11 = vsyncpa %s10, 0
    loop: start=0, step=1, limit=4
    $region2: #{tpu_custom_call.1} parent=1 // loop_pre_header
      _
    $region3: #{tpu_custom_call.1} parent=1 // loop_header
      %s13 = sphi 0, %s17
      %p14 = scmp.ge.s32.totalorder %s13, 4
      %s23 = sphi 0, %s25
      %s26 = sphi 0, %s23
      %s27 = sphi 0, %s26
      %s43 = sphi 0, %s27
      %s47 = sphi 0, %s47
      %s49 = sphi 0, %s47
      %s50 = sphi 0, %s49
      %s64 = sphi 0, %s50
      %s68 = sphi 0, %s68
      %s70 = sphi 0, %s68
      %s71 = sphi 0, %s70
      %s85 = sphi 0, %s71
      %s89 = sphi 0, %s89
      %s91 = sphi 0, %s89
      %s92 = sphi 0, %s91
      %s106 = sphi 0, %s92
      %s112 = sphi 0, %s114
      %s115 = sphi 0, %s112
      %s116 = sphi 0, %s115
      %s132 = sphi 0, %s116
    $region4: #{tpu_custom_call.1} parent=1 // loop_header_branch
      %16 = sbr.rel (%p14) target = $region8
    $region5: #{tpu_custom_call.1} parent=1 // loop_body
      %s18 = ssub.s32 %s13, 1
      %s19 = ssub.s32 %s13, 2
      %s20 = sadd.s32 %s13, 1
      %s21 = ssub.s32 %s13, %s20
      %p22 = scmp.eq.s32.totalorder %s21, 0
      %s24 = sadd.s32 %s23, 1
      %s25 = scalar_select %p22, %s23, %s24
      %p28 = pneg %p22
      %p29 = scmp.eq.s32.totalorder %s13, 1
      %p30 = por %p28, %p29
      %p31 = scmp.ne.s32.totalorder %s23, %s26
      %p32 = scmp.eq.s32.totalorder %s13, 0
      %p33 = por %p31, %p32
      %p34 = scmp.ne.s32.totalorder %s23, %s26
      %p35 = scmp.eq.s32.totalorder %s18, 1
      %p36 = por %p34, %p35
      %p37 = scmp.ne.s32.totalorder %s26, %s27
      %p38 = scmp.eq.s32.totalorder %s18, 0
      %p39 = por %p37, %p38
      %p40 = scmp.ne.s32.totalorder %s26, %s27
      %p41 = scmp.eq.s32.totalorder %s19, 1
      %p42 = por %p40, %p41
      %p44 = scmp.ne.s32.totalorder %s27, %s43
      %p45 = scmp.eq.s32.totalorder %s19, 0
      %p46 = por %p44, %p45
      %s48 = sadd.s32 %s47, 1
      %p51 = scmp.eq.s32.totalorder %s13, 1
      %p52 = scmp.ne.s32.totalorder %s47, %s49
      %p53 = scmp.eq.s32.totalorder %s13, 0
      %p54 = por %p52, %p53
      %p55 = scmp.ne.s32.totalorder %s47, %s49
      %p56 = scmp.eq.s32.totalorder %s18, 1
      %p57 = por %p55, %p56
      %p58 = scmp.ne.s32.totalorder %s49, %s50
      %p59 = scmp.eq.s32.totalorder %s18, 0
      %p60 = por %p58, %p59
      %p61 = scmp.ne.s32.totalorder %s49, %s50
      %p62 = scmp.eq.s32.totalorder %s19, 1
      %p63 = por %p61, %p62
      %p65 = scmp.ne.s32.totalorder %s50, %s64
      %p66 = scmp.eq.s32.totalorder %s19, 0
      %p67 = por %p65, %p66
      %s69 = sadd.s32 %s68, 1
      %p72 = scmp.eq.s32.totalorder %s13, 1
      %p73 = scmp.ne.s32.totalorder %s68, %s70
      %p74 = scmp.eq.s32.totalorder %s13, 0
      %p75 = por %p73, %p74
      %p76 = scmp.ne.s32.totalorder %s68, %s70
      %p77 = scmp.eq.s32.totalorder %s18, 1
      %p78 = por %p76, %p77
      %p79 = scmp.ne.s32.totalorder %s70, %s71
      %p80 = scmp.eq.s32.totalorder %s18, 0
      %p81 = por %p79, %p80
      %p82 = scmp.ne.s32.totalorder %s70, %s71
      %p83 = scmp.eq.s32.totalorder %s19, 1
      %p84 = por %p82, %p83
      %p86 = scmp.ne.s32.totalorder %s71, %s85
      %p87 = scmp.eq.s32.totalorder %s19, 0
      %p88 = por %p86, %p87
      %s90 = sadd.s32 %s89, 1
      %p93 = scmp.eq.s32.totalorder %s13, 1
      %p94 = scmp.ne.s32.totalorder %s89, %s91
      %p95 = scmp.eq.s32.totalorder %s13, 0
      %p96 = por %p94, %p95
      %p97 = scmp.ne.s32.totalorder %s89, %s91
      %p98 = scmp.eq.s32.totalorder %s18, 1
      %p99 = por %p97, %p98
      %p100 = scmp.ne.s32.totalorder %s91, %s92
      %p101 = scmp.eq.s32.totalorder %s18, 0
      %p102 = por %p100, %p101
      %p103 = scmp.ne.s32.totalorder %s91, %s92
      %p104 = scmp.eq.s32.totalorder %s19, 1
      %p105 = por %p103, %p104
      %p107 = scmp.ne.s32.totalorder %s92, %s106
      %p108 = scmp.eq.s32.totalorder %s19, 0
      %p109 = por %p107, %p108
      %s110 = ssub.s32 %s13, %s20
      %p111 = scmp.eq.s32.totalorder %s110, 0
      %s113 = sadd.s32 %s112, 1
      %s114 = scalar_select %p111, %s112, %s113
      %p117 = pneg %p111
      %p118 = scmp.eq.s32.totalorder %s13, 1
      %p119 = por %p117, %p118
      %p120 = scmp.ne.s32.totalorder %s112, %s115
      %p121 = scmp.eq.s32.totalorder %s13, 0
      %p122 = por %p120, %p121
      %p123 = scmp.ne.s32.totalorder %s112, %s115
      %p124 = scmp.eq.s32.totalorder %s18, 1
      %p125 = por %p123, %p124
      %p126 = scmp.ne.s32.totalorder %s115, %s116
      %p127 = scmp.eq.s32.totalorder %s18, 0
      %p128 = por %p126, %p127
      %p129 = scmp.ne.s32.totalorder %s115, %s116
      %p130 = scmp.eq.s32.totalorder %s19, 1
      %p131 = por %p129, %p130
      %p133 = scmp.ne.s32.totalorder %s116, %s132
      %p134 = scmp.eq.s32.totalorder %s19, 0
      %p135 = por %p133, %p134
      %p136 = scmp.le.s32.totalorder 1, %s13
      %p137 = scmp.lt.s32.totalorder %s13, 3
      %p138 = pnand %p136, %p137
      %p139 = pneg %p138
      // Predicated region
      $region9: #{tpu_custom_call.1} parent=5 // pred_check
        _
      $region10: #{tpu_custom_call.1} parent=5 // pred_check_branch
        %141 = sbr.rel (%p138) target = $region12
      $region11: #{tpu_custom_call.1} parent=5 // pred_region
        %s142 = ssub.s32 %s13, 1
        // Predicated region
        $region13: #{tpu_custom_call.1} parent=11 // pred_check
          %p143 = pneg %p60
        $region14: #{tpu_custom_call.1} parent=11 // pred_check_branch
          %145 = sbr.rel (%p143) target = $region16
        $region15: #{tpu_custom_call.1} parent=11 // pred_region
          _
        $region16: #{tpu_custom_call.1} parent=11 // pred_fallthru
          _
        // Predicated region
        $region17: #{tpu_custom_call.1} parent=11 // pred_check
          %p146 = pneg %p81
        $region18: #{tpu_custom_call.1} parent=11 // pred_check_branch
          %148 = sbr.rel (%p146) target = $region20
        $region19: #{tpu_custom_call.1} parent=11 // pred_region
          _
        $region20: #{tpu_custom_call.1} parent=11 // pred_fallthru
          _
        // Predicated region
        $region21: #{tpu_custom_call.1} parent=11 // pred_check
          %p149 = pneg %p102
        $region22: #{tpu_custom_call.1} parent=11 // pred_check_branch
          %151 = sbr.rel (%p149) target = $region24
        $region23: #{tpu_custom_call.1} parent=11 // pred_region
          _
        $region24: #{tpu_custom_call.1} parent=11 // pred_fallthru
          _
      $region12: #{tpu_custom_call.1} parent=5 // pred_fallthru
        _
      %p152 = scmp.lt.s32.totalorder %s13, 2
      // Predicated region
      $region25: #{tpu_custom_call.1} parent=5 // pred_check
        %p153 = pneg %p152
      $region26: #{tpu_custom_call.1} parent=5 // pred_check_branch
        %155 = sbr.rel (%p153) target = $region28
      $region27: #{tpu_custom_call.1} parent=5 // pred_region
        // Predicated region
        $region29: #{tpu_custom_call.1} parent=27 // pred_check
          %p156 = pneg %p33
        $region30: #{tpu_custom_call.1} parent=27 // pred_check_branch
          %158 = sbr.rel (%p156) target = $region32
        $region31: #{tpu_custom_call.1} parent=27 // pred_region
          %p159 = scmp.lt.s32.totalorder %s13, 1
          %s160 = scalar_select %p159, %s13, 1
          %s161 = smul.addr %s160, 8
          %s162 = scalar_lea.vmem %s0, %s161
        $region32: #{tpu_custom_call.1} parent=27 // pred_fallthru
          _
      $region28: #{tpu_custom_call.1} parent=5 // pred_fallthru
        _
      %p163 = scmp.le.s32.totalorder 1, %s13
      %p164 = scmp.lt.s32.totalorder %s13, 3
      %p165 = pnand %p163, %p164
      %p166 = pneg %p165
      // Predicated region
      $region33: #{tpu_custom_call.1} parent=5 // pred_check
        _
      $region34: #{tpu_custom_call.1} parent=5 // pred_check_branch
        %168 = sbr.rel (%p165) target = $region36
      $region35: #{tpu_custom_call.1} parent=5 // pred_region
        %s169 = ssub.s32 %s13, 1
        %p170 = scmp.lt.s32.totalorder %s18, 1
        %s171 = scalar_select %p170, %s18, 1
        %s172 = smul.addr %s171, 8
        %s173 = scalar_lea.vmem %s0, %s172
        %p174 = pneg %p39
        %p175 = pneg %p36
        %p176 = pneg %p60
        %p177 = pneg %p57
        %p178 = pneg %p81
        %p179 = pneg %p78
        %p180 = pneg %p102
        %p181 = pneg %p99
        %p182 = pneg %p128
        %p183 = pneg %p125
        %s184 = sand.u32 %s115, 1
        %s185 = scalar_lea.sflag [#allocation3], %s184
        %s186 = sand.u32 %s115, 1
        %s187 = smul.addr %s186, 4
        %s188 = scalar_lea.vmem [#allocation2], %s187
        %p189 = scmp.lt.s32.totalorder %s18, 1
        %s190 = scalar_select %p189, %s18, 1
        %s191 = smul.addr %s190, 8
        %s192 = scalar_lea.vmem %s0, %s191
        %v193 = vld [vmem:[%s192] sm:$0xff]
        %v194 = vld [vmem:[%s1] sm:$0xff]
        %v195 = vld [vmem:[%s1 + $0x8] sm:$0xff]
        %v196 = vld [vmem:[%s1 + $0x10] sm:$0xff]
        %v197 = vld [vmem:[%s1 + $0x18] sm:$0xff]
        %v198 = vld [vmem:[%s2] sm:$0x1]
        %v200 = vlaneseq
        %v201 = vshrl.u32 %v200, 7
        %v202 = vsub.s32 0, %v201
        %v203 = vrot.slane %v198, %v202
        %vm205 = vcmask 261120
        %v207 = vsel %vm205, %v193, 0
        %209 = vmatprep.subr.mxu0 0.0
        %210 = vmatpush1.msra.mxu0 %v194
        %211 = vmatprep.subr.mxu0 0.0
        %212 = vmatpush1.msra.mxu0 %v195
        %213 = vmatprep.subr.mxu0 0.0
        %214 = vmatpush1.msra.mxu0 %v196
        %215 = vmatprep.subr.mxu0 0.0
        %216 = vmatpush1.msra.mxu0 %v197
        %217 = vmatprep.subr.mxu0 0.0
        %218 = vmatpush1.msra.mxu0 0.0
        %219 = vmatprep.subr.mxu0 0.0
        %220 = vmatpush1.msra.mxu0 0.0
        %221 = vmatprep.subr.mxu0 0.0
        %222 = vmatpush1.msra.mxu0 0.0
        %223 = vmatprep.subr.mxu0 0.0
        %224 = vmatpush1.msra.mxu0 0.0
        %225 = vmatprep.subr.mxu0 0.0
        %226 = vmatpush1.msra.mxu0 0.0
        %227 = vmatprep.subr.mxu0 0.0
        %228 = vmatpush1.msra.mxu0 0.0
        %229 = vmatprep.subr.mxu0 0.0
        %230 = vmatpush1.msra.mxu0 0.0
        %231 = vmatprep.subr.mxu0 0.0
        %232 = vmatpush1.msra.mxu0 0.0
        %233 = vmatprep.subr.mxu0 0.0
        %234 = vmatpush1.msra.mxu0 0.0
        %235 = vmatprep.subr.mxu0 0.0
        %236 = vmatpush1.msra.mxu0 0.0
        %237 = vmatprep.subr.mxu0 0.0
        %238 = vmatpush1.msra.mxu0 0.0
        %239 = vmatprep.subr.mxu0 0.0
        %240 = vmatpush1.msra.mxu0 0.0
        %241 = vmatprep.subr.mxu0 0.0
        %242 = vmatpush1.msra.mxu0 0.0
        %243 = vmatprep.subr.mxu0 0.0
        %244 = vmatpush1.msra.mxu0 0.0
        %245 = vmatprep.subr.mxu0 0.0
        %246 = vmatpush1.msra.mxu0 0.0
        %247 = vmatprep.subr.mxu0 0.0
        %248 = vmatpush1.msra.mxu0 0.0
        %249 = vmatprep.subr.mxu0 0.0
        %250 = vmatpush1.msra.mxu0 0.0
        %251 = vmatprep.subr.mxu0 0.0
        %252 = vmatpush1.msra.mxu0 0.0
        %253 = vmatprep.subr.mxu0 0.0
        %254 = vmatpush1.msra.mxu0 0.0
        %255 = vmatprep.subr.mxu0 0.0
        %256 = vmatpush1.msra.mxu0 0.0
        %257 = vmatprep.subr.mxu0 0.0
        %258 = vmatpush1.msra.mxu0 0.0
        %259 = vmatprep.subr.mxu0 0.0
        %260 = vmatpush1.msra.mxu0 0.0
        %261 = vmatprep.subr.mxu0 0.0
        %262 = vmatpush1.msra.mxu0 0.0
        %263 = vmatprep.subr.mxu0 0.0
        %264 = vmatpush1.msra.mxu0 0.0
        %265 = vmatprep.subr.mxu0 0.0
        %266 = vmatpush1.msra.mxu0 0.0
        %267 = vmatprep.subr.mxu0 0.0
        %268 = vmatpush1.msra.mxu0 0.0
        %269 = vmatprep.subr.mxu0 0.0
        %270 = vmatpush1.msra.mxu0 0.0
        %271 = vmatprep.subr.mxu0 0.0
        %272 = vmatpush1.msra.mxu0 0.0
        %273 = vmatprep.mubr.f32.mxu0 0.0
        %274 = vmatmul.mubr.f32.gmra.mrb[0].mxu0 %v207
        %v275 = vpop.f32.mrb[0].mxu0
        %v276 = vadd.f32 %v203, %v275
        %v277 = vpop.f32.mrb[0].mxu0
        %278 = vdwg.mxu0
        %v279 = vld [vmem:[%s3] sm:$0xf]
        %vm280 = vcmask 31744
        %v282 = vsel %vm280, %v279, 0
        %v285 = vsel %vm280, %v276, 0
        %287 = vmatprep.subr.mxu0 0.0
        %288 = vmatpush1.xpose.msra.mxu0 %v285
        %289 = vmatprep.subr.mxu0 0.0
        %290 = vmatpush1.xpose.msra.mxu0 0.0
        %291 = vmatprep.subr.mxu0 0.0
        %292 = vmatpush1.xpose.msra.mxu0 0.0
        %293 = vmatprep.subr.mxu0 0.0
        %294 = vmatpush1.xpose.msra.mxu0 0.0
        %295 = vmatprep.subr.mxu0 0.0
        %296 = vmatpush1.xpose.msra.mxu0 0.0
        %297 = vmatprep.subr.mxu0 0.0
        %298 = vmatpush1.xpose.msra.mxu0 0.0
        %299 = vmatprep.subr.mxu0 0.0
        %300 = vmatpush1.xpose.msra.mxu0 0.0
        %301 = vmatprep.subr.mxu0 0.0
        %302 = vmatpush1.xpose.msra.mxu0 0.0
        %303 = vmatprep.subr.mxu0 0.0
        %304 = vmatpush1.xpose.msra.mxu0 0.0
        %305 = vmatprep.subr.mxu0 0.0
        %306 = vmatpush1.xpose.msra.mxu0 0.0
        %307 = vmatprep.subr.mxu0 0.0
        %308 = vmatpush1.xpose.msra.mxu0 0.0
        %309 = vmatprep.subr.mxu0 0.0
        %310 = vmatpush1.xpose.msra.mxu0 0.0
        %311 = vmatprep.subr.mxu0 0.0
        %312 = vmatpush1.xpose.msra.mxu0 0.0
        %313 = vmatprep.subr.mxu0 0.0
        %314 = vmatpush1.xpose.msra.mxu0 0.0
        %315 = vmatprep.subr.mxu0 0.0
        %316 = vmatpush1.xpose.msra.mxu0 0.0
        %317 = vmatprep.subr.mxu0 0.0
        %318 = vmatpush1.xpose.msra.mxu0 0.0
        %319 = vmatprep.subr.mxu0 0.0
        %320 = vmatpush1.xpose.msra.mxu0 0.0
        %321 = vmatprep.subr.mxu0 0.0
        %322 = vmatpush1.xpose.msra.mxu0 0.0
        %323 = vmatprep.subr.mxu0 0.0
        %324 = vmatpush1.xpose.msra.mxu0 0.0
        %325 = vmatprep.subr.mxu0 0.0
        %326 = vmatpush1.xpose.msra.mxu0 0.0
        %327 = vmatprep.subr.mxu0 0.0
        %328 = vmatpush1.xpose.msra.mxu0 0.0
        %329 = vmatprep.subr.mxu0 0.0
        %330 = vmatpush1.xpose.msra.mxu0 0.0
        %331 = vmatprep.subr.mxu0 0.0
        %332 = vmatpush1.xpose.msra.mxu0 0.0
        %333 = vmatprep.subr.mxu0 0.0
        %334 = vmatpush1.xpose.msra.mxu0 0.0
        %335 = vmatprep.subr.mxu0 0.0
        %336 = vmatpush1.xpose.msra.mxu0 0.0
        %337 = vmatprep.subr.mxu0 0.0
        %338 = vmatpush1.xpose.msra.mxu0 0.0
        %339 = vmatprep.subr.mxu0 0.0
        %340 = vmatpush1.xpose.msra.mxu0 0.0
        %341 = vmatprep.subr.mxu0 0.0
        %342 = vmatpush1.xpose.msra.mxu0 0.0
        %343 = vmatprep.subr.mxu0 0.0
        %344 = vmatpush1.xpose.msra.mxu0 0.0
        %345 = vmatprep.subr.mxu0 0.0
        %346 = vmatpush1.xpose.msra.mxu0 0.0
        %347 = vmatprep.subr.mxu0 0.0
        %348 = vmatpush1.xpose.msra.mxu0 0.0
        %349 = vmatprep.subr.mxu0 0.0
        %350 = vmatpush1.xpose.msra.mxu0 0.0
        %351 = vmatprep.mubr.f32.mxu0 0.0
        %352 = vmatmul.mubr.f32.gmra.mrb[0].mxu0 %v282
        %v353 = vpop.f32.mrb[0].mxu0
        %v354 = vadd.f32 0.0, %v353
        %v355 = vpop.f32.mrb[0].mxu0
        %356 = vdwg.mxu0
        %vm357 = vcmask 60416
        %v358 = vsel %vm357, %v354, -inf
        %359 = vmax.xlane.f32.xlu0 %v358
        %v360 = vpop.xlane.xlu0 %359
        %v361 = vsub.f32 %v354, %v360
        %v362 = vmul.f32 %v361, 1.442695
        %v363 = vpow.pop %v362
        %v364 = vsel %vm357, %v363, 0.0
        %365 = vadd.xlane.f32.xlu0 %v364
        %v366 = vpop.xlane.xlu0 %365
        %v367 = vrcp.pop %v366
        %v368 = vmul.f32 %v363, %v367
        %369 = vrot.lane.b32.xlu0 %v276, 96
        %v370 = vpop.permute.xlu0 %369
        %vm372 = vcmask 64512
        %v374 = vsel %vm372, %v368, 0
        %376 = vmatprep.subr.mxu0 0.0
        %377 = vmatpush1.msra.mxu0 %v370
        %378 = vmatprep.subr.mxu0 0.0
        %379 = vmatpush1.msra.mxu0 0.0
        %380 = vmatprep.subr.mxu0 0.0
        %381 = vmatpush1.msra.mxu0 0.0
        %382 = vmatprep.subr.mxu0 0.0
        %383 = vmatpush1.msra.mxu0 0.0
        %384 = vmatprep.subr.mxu0 0.0
        %385 = vmatpush1.msra.mxu0 0.0
        %386 = vmatprep.subr.mxu0 0.0
        %387 = vmatpush1.msra.mxu0 0.0
        %388 = vmatprep.subr.mxu0 0.0
        %389 = vmatpush1.msra.mxu0 0.0
        %390 = vmatprep.subr.mxu0 0.0
        %391 = vmatpush1.msra.mxu0 0.0
        %392 = vmatprep.subr.mxu0 0.0
        %393 = vmatpush1.msra.mxu0 0.0
        %394 = vmatprep.subr.mxu0 0.0
        %395 = vmatpush1.msra.mxu0 0.0
        %396 = vmatprep.subr.mxu0 0.0
        %397 = vmatpush1.msra.mxu0 0.0
        %398 = vmatprep.subr.mxu0 0.0
        %399 = vmatpush1.msra.mxu0 0.0
        %400 = vmatprep.subr.mxu0 0.0
        %401 = vmatpush1.msra.mxu0 0.0
        %402 = vmatprep.subr.mxu0 0.0
        %403 = vmatpush1.msra.mxu0 0.0
        %404 = vmatprep.subr.mxu0 0.0
        %405 = vmatpush1.msra.mxu0 0.0
        %406 = vmatprep.subr.mxu0 0.0
        %407 = vmatpush1.msra.mxu0 0.0
        %408 = vmatprep.subr.mxu0 0.0
        %409 = vmatpush1.msra.mxu0 0.0
        %410 = vmatprep.subr.mxu0 0.0
        %411 = vmatpush1.msra.mxu0 0.0
        %412 = vmatprep.subr.mxu0 0.0
        %413 = vmatpush1.msra.mxu0 0.0
        %414 = vmatprep.subr.mxu0 0.0
        %415 = vmatpush1.msra.mxu0 0.0
        %416 = vmatprep.subr.mxu0 0.0
        %417 = vmatpush1.msra.mxu0 0.0
        %418 = vmatprep.subr.mxu0 0.0
        %419 = vmatpush1.msra.mxu0 0.0
        %420 = vmatprep.subr.mxu0 0.0
        %421 = vmatpush1.msra.mxu0 0.0
        %422 = vmatprep.subr.mxu0 0.0
        %423 = vmatpush1.msra.mxu0 0.0
        %424 = vmatprep.subr.mxu0 0.0
        %425 = vmatpush1.msra.mxu0 0.0
        %426 = vmatprep.subr.mxu0 0.0
        %427 = vmatpush1.msra.mxu0 0.0
        %428 = vmatprep.subr.mxu0 0.0
        %429 = vmatpush1.msra.mxu0 0.0
        %430 = vmatprep.subr.mxu0 0.0
        %431 = vmatpush1.msra.mxu0 0.0
        %432 = vmatprep.subr.mxu0 0.0
        %433 = vmatpush1.msra.mxu0 0.0
        %434 = vmatprep.subr.mxu0 0.0
        %435 = vmatpush1.msra.mxu0 0.0
        %436 = vmatprep.subr.mxu0 0.0
        %437 = vmatpush1.msra.mxu0 0.0
        %438 = vmatprep.subr.mxu0 0.0
        %439 = vmatpush1.msra.mxu0 0.0
        %440 = vmatprep.mubr.f32.mxu0 0.0
        %441 = vmatmul.mubr.f32.gmra.mrb[0].mxu0 %v374
        %v442 = vpop.f32.mrb[0].mxu0
        %v443 = vadd.f32 0.0, %v442
        %v444 = vpop.f32.mrb[0].mxu0
        %445 = vdwg.mxu0
        %s446 = scalar_lea.vmem %s3, 4
        %v447 = vld [vmem:[%s446] sm:$0xf]
        %448 = vrot.lane.b32.xlu0 %v276, 124
        %v449 = vpop.permute.xlu0 %448
        %v451 = vsel %vm280, %v447, 0
        %v453 = vsel %vm280, %v449, 0
        %455 = vmatprep.subr.mxu0 0.0
        %456 = vmatpush1.xpose.msra.mxu0 %v453
        %457 = vmatprep.subr.mxu0 0.0
        %458 = vmatpush1.xpose.msra.mxu0 0.0
        %459 = vmatprep.subr.mxu0 0.0
        %460 = vmatpush1.xpose.msra.mxu0 0.0
        %461 = vmatprep.subr.mxu0 0.0
        %462 = vmatpush1.xpose.msra.mxu0 0.0
        %463 = vmatprep.subr.mxu0 0.0
        %464 = vmatpush1.xpose.msra.mxu0 0.0
        %465 = vmatprep.subr.mxu0 0.0
        %466 = vmatpush1.xpose.msra.mxu0 0.0
        %467 = vmatprep.subr.mxu0 0.0
        %468 = vmatpush1.xpose.msra.mxu0 0.0
        %469 = vmatprep.subr.mxu0 0.0
        %470 = vmatpush1.xpose.msra.mxu0 0.0
        %471 = vmatprep.subr.mxu0 0.0
        %472 = vmatpush1.xpose.msra.mxu0 0.0
        %473 = vmatprep.subr.mxu0 0.0
        %474 = vmatpush1.xpose.msra.mxu0 0.0
        %475 = vmatprep.subr.mxu0 0.0
        %476 = vmatpush1.xpose.msra.mxu0 0.0
        %477 = vmatprep.subr.mxu0 0.0
        %478 = vmatpush1.xpose.msra.mxu0 0.0
        %479 = vmatprep.subr.mxu0 0.0
        %480 = vmatpush1.xpose.msra.mxu0 0.0
        %481 = vmatprep.subr.mxu0 0.0
        %482 = vmatpush1.xpose.msra.mxu0 0.0
        %483 = vmatprep.subr.mxu0 0.0
        %484 = vmatpush1.xpose.msra.mxu0 0.0
        %485 = vmatprep.subr.mxu0 0.0
        %486 = vmatpush1.xpose.msra.mxu0 0.0
        %487 = vmatprep.subr.mxu0 0.0
        %488 = vmatpush1.xpose.msra.mxu0 0.0
        %489 = vmatprep.subr.mxu0 0.0
        %490 = vmatpush1.xpose.msra.mxu0 0.0
        %491 = vmatprep.subr.mxu0 0.0
        %492 = vmatpush1.xpose.msra.mxu0 0.0
        %493 = vmatprep.subr.mxu0 0.0
        %494 = vmatpush1.xpose.msra.mxu0 0.0
        %495 = vmatprep.subr.mxu0 0.0
        %496 = vmatpush1.xpose.msra.mxu0 0.0
        %497 = vmatprep.subr.mxu0 0.0
        %498 = vmatpush1.xpose.msra.mxu0 0.0
        %499 = vmatprep.subr.mxu0 0.0
        %500 = vmatpush1.xpose.msra.mxu0 0.0
        %501 = vmatprep.subr.mxu0 0.0
        %502 = vmatpush1.xpose.msra.mxu0 0.0
        %503 = vmatprep.subr.mxu0 0.0
        %504 = vmatpush1.xpose.msra.mxu0 0.0
        %505 = vmatprep.subr.mxu0 0.0
        %506 = vmatpush1.xpose.msra.mxu0 0.0
        %507 = vmatprep.subr.mxu0 0.0
        %508 = vmatpush1.xpose.msra.mxu0 0.0
        %509 = vmatprep.subr.mxu0 0.0
        %510 = vmatpush1.xpose.msra.mxu0 0.0
        %511 = vmatprep.subr.mxu0 0.0
        %512 = vmatpush1.xpose.msra.mxu0 0.0
        %513 = vmatprep.subr.mxu0 0.0
        %514 = vmatpush1.xpose.msra.mxu0 0.0
        %515 = vmatprep.subr.mxu0 0.0
        %516 = vmatpush1.xpose.msra.mxu0 0.0
        %517 = vmatprep.subr.mxu0 0.0
        %518 = vmatpush1.xpose.msra.mxu0 0.0
        %519 = vmatprep.mubr.f32.mxu0 0.0
        %520 = vmatmul.mubr.f32.gmra.mrb[0].mxu0 %v451
        %v521 = vpop.f32.mrb[0].mxu0
        %v522 = vadd.f32 0.0, %v521
        %v523 = vpop.f32.mrb[0].mxu0
        %524 = vdwg.mxu0
        %v525 = vsel %vm357, %v522, -inf
        %526 = vmax.xlane.f32.xlu0 %v525
        %v527 = vpop.xlane.xlu0 %526
        %v528 = vsub.f32 %v522, %v527
        %v529 = vmul.f32 %v528, 1.442695
        %v530 = vpow.pop %v529
        %v531 = vsel %vm357, %v530, 0.0
        %532 = vadd.xlane.f32.xlu0 %v531
        %v533 = vpop.xlane.xlu0 %532
        %v534 = vrcp.pop %v533
        %v535 = vmul.f32 %v530, %v534
        %536 = vrot.lane.b32.xlu0 %v276, 92
        %v537 = vpop.permute.xlu0 %536
        %v540 = vsel %vm372, %v535, 0
        %542 = vmatprep.subr.mxu0 0.0
        %543 = vmatpush1.msra.mxu0 %v537
        %544 = vmatprep.subr.mxu0 0.0
        %545 = vmatpush1.msra.mxu0 0.0
        %546 = vmatprep.subr.mxu0 0.0
        %547 = vmatpush1.msra.mxu0 0.0
        %548 = vmatprep.subr.mxu0 0.0
        %549 = vmatpush1.msra.mxu0 0.0
        %550 = vmatprep.subr.mxu0 0.0
        %551 = vmatpush1.msra.mxu0 0.0
        %552 = vmatprep.subr.mxu0 0.0
        %553 = vmatpush1.msra.mxu0 0.0
        %554 = vmatprep.subr.mxu0 0.0
        %555 = vmatpush1.msra.mxu0 0.0
        %556 = vmatprep.subr.mxu0 0.0
        %557 = vmatpush1.msra.mxu0 0.0
        %558 = vmatprep.subr.mxu0 0.0
        %559 = vmatpush1.msra.mxu0 0.0
        %560 = vmatprep.subr.mxu0 0.0
        %561 = vmatpush1.msra.mxu0 0.0
        %562 = vmatprep.subr.mxu0 0.0
        %563 = vmatpush1.msra.mxu0 0.0
        %564 = vmatprep.subr.mxu0 0.0
        %565 = vmatpush1.msra.mxu0 0.0
        %566 = vmatprep.subr.mxu0 0.0
        %567 = vmatpush1.msra.mxu0 0.0
        %568 = vmatprep.subr.mxu0 0.0
        %569 = vmatpush1.msra.mxu0 0.0
        %570 = vmatprep.subr.mxu0 0.0
        %571 = vmatpush1.msra.mxu0 0.0
        %572 = vmatprep.subr.mxu0 0.0
        %573 = vmatpush1.msra.mxu0 0.0
        %574 = vmatprep.subr.mxu0 0.0
        %575 = vmatpush1.msra.mxu0 0.0
        %576 = vmatprep.subr.mxu0 0.0
        %577 = vmatpush1.msra.mxu0 0.0
        %578 = vmatprep.subr.mxu0 0.0
        %579 = vmatpush1.msra.mxu0 0.0
        %580 = vmatprep.subr.mxu0 0.0
        %581 = vmatpush1.msra.mxu0 0.0
        %582 = vmatprep.subr.mxu0 0.0
        %583 = vmatpush1.msra.mxu0 0.0
        %584 = vmatprep.subr.mxu0 0.0
        %585 = vmatpush1.msra.mxu0 0.0
        %586 = vmatprep.subr.mxu0 0.0
        %587 = vmatpush1.msra.mxu0 0.0
        %588 = vmatprep.subr.mxu0 0.0
        %589 = vmatpush1.msra.mxu0 0.0
        %590 = vmatprep.subr.mxu0 0.0
        %591 = vmatpush1.msra.mxu0 0.0
        %592 = vmatprep.subr.mxu0 0.0
        %593 = vmatpush1.msra.mxu0 0.0
        %594 = vmatprep.subr.mxu0 0.0
        %595 = vmatpush1.msra.mxu0 0.0
        %596 = vmatprep.subr.mxu0 0.0
        %597 = vmatpush1.msra.mxu0 0.0
        %598 = vmatprep.subr.mxu0 0.0
        %599 = vmatpush1.msra.mxu0 0.0
        %600 = vmatprep.subr.mxu0 0.0
        %601 = vmatpush1.msra.mxu0 0.0
        %602 = vmatprep.subr.mxu0 0.0
        %603 = vmatpush1.msra.mxu0 0.0
        %604 = vmatprep.subr.mxu0 0.0
        %605 = vmatpush1.msra.mxu0 0.0
        %606 = vmatprep.mubr.f32.mxu0 0.0
        %607 = vmatmul.mubr.f32.gmra.mrb[0].mxu0 %v540
        %v608 = vpop.f32.mrb[0].mxu0
        %v609 = vadd.f32 0.0, %v608
        %v610 = vpop.f32.mrb[0].mxu0
        %611 = vdwg.mxu0
        %s612 = scalar_lea.vmem %s3, 8
        %v613 = vld [vmem:[%s612] sm:$0xf]
        %614 = vrot.lane.b32.xlu0 %v276, 120
        %v615 = vpop.permute.xlu0 %614
        %v617 = vsel %vm280, %v613, 0
        %v619 = vsel %vm280, %v615, 0
        %621 = vmatprep.subr.mxu0 0.0
        %622 = vmatpush1.xpose.msra.mxu0 %v619
        %623 = vmatprep.subr.mxu0 0.0
        %624 = vmatpush1.xpose.msra.mxu0 0.0
        %625 = vmatprep.subr.mxu0 0.0
        %626 = vmatpush1.xpose.msra.mxu0 0.0
        %627 = vmatprep.subr.mxu0 0.0
        %628 = vmatpush1.xpose.msra.mxu0 0.0
        %629 = vmatprep.subr.mxu0 0.0
        %630 = vmatpush1.xpose.msra.mxu0 0.0
        %631 = vmatprep.subr.mxu0 0.0
        %632 = vmatpush1.xpose.msra.mxu0 0.0
        %633 = vmatprep.subr.mxu0 0.0
        %634 = vmatpush1.xpose.msra.mxu0 0.0
        %635 = vmatprep.subr.mxu0 0.0
        %636 = vmatpush1.xpose.msra.mxu0 0.0
        %637 = vmatprep.subr.mxu0 0.0
        %638 = vmatpush1.xpose.msra.mxu0 0.0
        %639 = vmatprep.subr.mxu0 0.0
        %640 = vmatpush1.xpose.msra.mxu0 0.0
        %641 = vmatprep.subr.mxu0 0.0
        %642 = vmatpush1.xpose.msra.mxu0 0.0
        %643 = vmatprep.subr.mxu0 0.0
        %644 = vmatpush1.xpose.msra.mxu0 0.0
        %645 = vmatprep.subr.mxu0 0.0
        %646 = vmatpush1.xpose.msra.mxu0 0.0
        %647 = vmatprep.subr.mxu0 0.0
        %648 = vmatpush1.xpose.msra.mxu0 0.0
        %649 = vmatprep.subr.mxu0 0.0
        %650 = vmatpush1.xpose.msra.mxu0 0.0
        %651 = vmatprep.subr.mxu0 0.0
        %652 = vmatpush1.xpose.msra.mxu0 0.0
        %653 = vmatprep.subr.mxu0 0.0
        %654 = vmatpush1.xpose.msra.mxu0 0.0
        %655 = vmatprep.subr.mxu0 0.0
        %656 = vmatpush1.xpose.msra.mxu0 0.0
        %657 = vmatprep.subr.mxu0 0.0
        %658 = vmatpush1.xpose.msra.mxu0 0.0
        %659 = vmatprep.subr.mxu0 0.0
        %660 = vmatpush1.xpose.msra.mxu0 0.0
        %661 = vmatprep.subr.mxu0 0.0
        %662 = vmatpush1.xpose.msra.mxu0 0.0
        %663 = vmatprep.subr.mxu0 0.0
        %664 = vmatpush1.xpose.msra.mxu0 0.0
        %665 = vmatprep.subr.mxu0 0.0
        %666 = vmatpush1.xpose.msra.mxu0 0.0
        %667 = vmatprep.subr.mxu0 0.0
        %668 = vmatpush1.xpose.msra.mxu0 0.0
        %669 = vmatprep.subr.mxu0 0.0
        %670 = vmatpush1.xpose.msra.mxu0 0.0
        %671 = vmatprep.subr.mxu0 0.0
        %672 = vmatpush1.xpose.msra.mxu0 0.0
        %673 = vmatprep.subr.mxu0 0.0
        %674 = vmatpush1.xpose.msra.mxu0 0.0
        %675 = vmatprep.subr.mxu0 0.0
        %676 = vmatpush1.xpose.msra.mxu0 0.0
        %677 = vmatprep.subr.mxu0 0.0
        %678 = vmatpush1.xpose.msra.mxu0 0.0
        %679 = vmatprep.subr.mxu0 0.0
        %680 = vmatpush1.xpose.msra.mxu0 0.0
        %681 = vmatprep.subr.mxu0 0.0
        %682 = vmatpush1.xpose.msra.mxu0 0.0
        %683 = vmatprep.subr.mxu0 0.0
        %684 = vmatpush1.xpose.msra.mxu0 0.0
        %685 = vmatprep.mubr.f32.mxu0 0.0
        %686 = vmatmul.mubr.f32.gmra.mrb[0].mxu0 %v617
        %v687 = vpop.f32.mrb[0].mxu0
        %v688 = vadd.f32 0.0, %v687
        %v689 = vpop.f32.mrb[0].mxu0
        %690 = vdwg.mxu0
        %v691 = vsel %vm357, %v688, -inf
        %692 = vmax.xlane.f32.xlu0 %v691
        %v693 = vpop.xlane.xlu0 %692
        %v694 = vsub.f32 %v688, %v693
        %v695 = vmul.f32 %v694, 1.442695
        %v696 = vpow.pop %v695
        %v697 = vsel %vm357, %v696, 0.0
        %698 = vadd.xlane.f32.xlu0 %v697
        %v699 = vpop.xlane.xlu0 %698
        %v700 = vrcp.pop %v699
        %v701 = vmul.f32 %v696, %v700
        %702 = vrot.lane.b32.xlu0 %v276, 88
        %v703 = vpop.permute.xlu0 %702
        %v706 = vsel %vm372, %v701, 0
        %708 = vmatprep.subr.mxu0 0.0
        %709 = vmatpush1.msra.mxu0 %v703
        %710 = vmatprep.subr.mxu0 0.0
        %711 = vmatpush1.msra.mxu0 0.0
        %712 = vmatprep.subr.mxu0 0.0
        %713 = vmatpush1.msra.mxu0 0.0
        %714 = vmatprep.subr.mxu0 0.0
        %715 = vmatpush1.msra.mxu0 0.0
        %716 = vmatprep.subr.mxu0 0.0
        %717 = vmatpush1.msra.mxu0 0.0
        %718 = vmatprep.subr.mxu0 0.0
        %719 = vmatpush1.msra.mxu0 0.0
        %720 = vmatprep.subr.mxu0 0.0
        %721 = vmatpush1.msra.mxu0 0.0
        %722 = vmatprep.subr.mxu0 0.0
        %723 = vmatpush1.msra.mxu0 0.0
        %724 = vmatprep.subr.mxu0 0.0
        %725 = vmatpush1.msra.mxu0 0.0
        %726 = vmatprep.subr.mxu0 0.0
        %727 = vmatpush1.msra.mxu0 0.0
        %728 = vmatprep.subr.mxu0 0.0
        %729 = vmatpush1.msra.mxu0 0.0
        %730 = vmatprep.subr.mxu0 0.0
        %731 = vmatpush1.msra.mxu0 0.0
        %732 = vmatprep.subr.mxu0 0.0
        %733 = vmatpush1.msra.mxu0 0.0
        %734 = vmatprep.subr.mxu0 0.0
        %735 = vmatpush1.msra.mxu0 0.0
        %736 = vmatprep.subr.mxu0 0.0
        %737 = vmatpush1.msra.mxu0 0.0
        %738 = vmatprep.subr.mxu0 0.0
        %739 = vmatpush1.msra.mxu0 0.0
        %740 = vmatprep.subr.mxu0 0.0
        %741 = vmatpush1.msra.mxu0 0.0
        %742 = vmatprep.subr.mxu0 0.0
        %743 = vmatpush1.msra.mxu0 0.0
        %744 = vmatprep.subr.mxu0 0.0
        %745 = vmatpush1.msra.mxu0 0.0
        %746 = vmatprep.subr.mxu0 0.0
        %747 = vmatpush1.msra.mxu0 0.0
        %748 = vmatprep.subr.mxu0 0.0
        %749 = vmatpush1.msra.mxu0 0.0
        %750 = vmatprep.subr.mxu0 0.0
        %751 = vmatpush1.msra.mxu0 0.0
        %752 = vmatprep.subr.mxu0 0.0
        %753 = vmatpush1.msra.mxu0 0.0
        %754 = vmatprep.subr.mxu0 0.0
        %755 = vmatpush1.msra.mxu0 0.0
        %756 = vmatprep.subr.mxu0 0.0
        %757 = vmatpush1.msra.mxu0 0.0
        %758 = vmatprep.subr.mxu0 0.0
        %759 = vmatpush1.msra.mxu0 0.0
        %760 = vmatprep.subr.mxu0 0.0
        %761 = vmatpush1.msra.mxu0 0.0
        %762 = vmatprep.subr.mxu0 0.0
        %763 = vmatpush1.msra.mxu0 0.0
        %764 = vmatprep.subr.mxu0 0.0
        %765 = vmatpush1.msra.mxu0 0.0
        %766 = vmatprep.subr.mxu0 0.0
        %767 = vmatpush1.msra.mxu0 0.0
        %768 = vmatprep.subr.mxu0 0.0
        %769 = vmatpush1.msra.mxu0 0.0
        %770 = vmatprep.subr.mxu0 0.0
        %771 = vmatpush1.msra.mxu0 0.0
        %772 = vmatprep.mubr.f32.mxu0 0.0
        %773 = vmatmul.mubr.f32.gmra.mrb[0].mxu0 %v706
        %v774 = vpop.f32.mrb[0].mxu0
        %v775 = vadd.f32 0.0, %v774
        %v776 = vpop.f32.mrb[0].mxu0
        %777 = vdwg.mxu0
        %s778 = scalar_lea.vmem %s3, 12
        %v779 = vld [vmem:[%s778] sm:$0xf]
        %780 = vrot.lane.b32.xlu0 %v276, 116
        %v781 = vpop.permute.xlu0 %780
        %v783 = vsel %vm280, %v779, 0
        %v785 = vsel %vm280, %v781, 0
        %787 = vmatprep.subr.mxu0 0.0
        %788 = vmatpush1.xpose.msra.mxu0 %v785
        %789 = vmatprep.subr.mxu0 0.0
        %790 = vmatpush1.xpose.msra.mxu0 0.0
        %791 = vmatprep.subr.mxu0 0.0
        %792 = vmatpush1.xpose.msra.mxu0 0.0
        %793 = vmatprep.subr.mxu0 0.0
        %794 = vmatpush1.xpose.msra.mxu0 0.0
        %795 = vmatprep.subr.mxu0 0.0
        %796 = vmatpush1.xpose.msra.mxu0 0.0
        %797 = vmatprep.subr.mxu0 0.0
        %798 = vmatpush1.xpose.msra.mxu0 0.0
        %799 = vmatprep.subr.mxu0 0.0
        %800 = vmatpush1.xpose.msra.mxu0 0.0
        %801 = vmatprep.subr.mxu0 0.0
        %802 = vmatpush1.xpose.msra.mxu0 0.0
        %803 = vmatprep.subr.mxu0 0.0
        %804 = vmatpush1.xpose.msra.mxu0 0.0
        %805 = vmatprep.subr.mxu0 0.0
        %806 = vmatpush1.xpose.msra.mxu0 0.0
        %807 = vmatprep.subr.mxu0 0.0
        %808 = vmatpush1.xpose.msra.mxu0 0.0
        %809 = vmatprep.subr.mxu0 0.0
        %810 = vmatpush1.xpose.msra.mxu0 0.0
        %811 = vmatprep.subr.mxu0 0.0
        %812 = vmatpush1.xpose.msra.mxu0 0.0
        %813 = vmatprep.subr.mxu0 0.0
        %814 = vmatpush1.xpose.msra.mxu0 0.0
        %815 = vmatprep.subr.mxu0 0.0
        %816 = vmatpush1.xpose.msra.mxu0 0.0
        %817 = vmatprep.subr.mxu0 0.0
        %818 = vmatpush1.xpose.msra.mxu0 0.0
        %819 = vmatprep.subr.mxu0 0.0
        %820 = vmatpush1.xpose.msra.mxu0 0.0
        %821 = vmatprep.subr.mxu0 0.0
        %822 = vmatpush1.xpose.msra.mxu0 0.0
        %823 = vmatprep.subr.mxu0 0.0
        %824 = vmatpush1.xpose.msra.mxu0 0.0
        %825 = vmatprep.subr.mxu0 0.0
        %826 = vmatpush1.xpose.msra.mxu0 0.0
        %827 = vmatprep.subr.mxu0 0.0
        %828 = vmatpush1.xpose.msra.mxu0 0.0
        %829 = vmatprep.subr.mxu0 0.0
        %830 = vmatpush1.xpose.msra.mxu0 0.0
        %831 = vmatprep.subr.mxu0 0.0
        %832 = vmatpush1.xpose.msra.mxu0 0.0
        %833 = vmatprep.subr.mxu0 0.0
        %834 = vmatpush1.xpose.msra.mxu0 0.0
        %835 = vmatprep.subr.mxu0 0.0
        %836 = vmatpush1.xpose.msra.mxu0 0.0
        %837 = vmatprep.subr.mxu0 0.0
        %838 = vmatpush1.xpose.msra.mxu0 0.0
        %839 = vmatprep.subr.mxu0 0.0
        %840 = vmatpush1.xpose.msra.mxu0 0.0
        %841 = vmatprep.subr.mxu0 0.0
        %842 = vmatpush1.xpose.msra.mxu0 0.0
        %843 = vmatprep.subr.mxu0 0.0
        %844 = vmatpush1.xpose.msra.mxu0 0.0
        %845 = vmatprep.subr.mxu0 0.0
        %846 = vmatpush1.xpose.msra.mxu0 0.0
        %847 = vmatprep.subr.mxu0 0.0
        %848 = vmatpush1.xpose.msra.mxu0 0.0
        %849 = vmatprep.subr.mxu0 0.0
        %850 = vmatpush1.xpose.msra.mxu0 0.0
        %851 = vmatprep.mubr.f32.mxu0 0.0
        %852 = vmatmul.mubr.f32.gmra.mrb[0].mxu0 %v783
        %v853 = vpop.f32.mrb[0].mxu0
        %v854 = vadd.f32 0.0, %v853
        %v855 = vpop.f32.mrb[0].mxu0
        %856 = vdwg.mxu0
        %v857 = vsel %vm357, %v854, -inf
        %858 = vmax.xlane.f32.xlu0 %v857
        %v859 = vpop.xlane.xlu0 %858
        %v860 = vsub.f32 %v854, %v859
        %v861 = vmul.f32 %v860, 1.442695
        %v862 = vpow.pop %v861
        %v863 = vsel %vm357, %v862, 0.0
        %864 = vadd.xlane.f32.xlu0 %v863
        %v865 = vpop.xlane.xlu0 %864
        %v866 = vrcp.pop %v865
        %v867 = vmul.f32 %v862, %v866
        %868 = vrot.lane.b32.xlu0 %v276, 84
        %v869 = vpop.permute.xlu0 %868
        %v872 = vsel %vm372, %v867, 0
        %874 = vmatprep.subr.mxu0 0.0
        %875 = vmatpush1.msra.mxu0 %v869
        %876 = vmatprep.subr.mxu0 0.0
        %877 = vmatpush1.msra.mxu0 0.0
        %878 = vmatprep.subr.mxu0 0.0
        %879 = vmatpush1.msra.mxu0 0.0
        %880 = vmatprep.subr.mxu0 0.0
        %881 = vmatpush1.msra.mxu0 0.0
        %882 = vmatprep.subr.mxu0 0.0
        %883 = vmatpush1.msra.mxu0 0.0
        %884 = vmatprep.subr.mxu0 0.0
        %885 = vmatpush1.msra.mxu0 0.0
        %886 = vmatprep.subr.mxu0 0.0
        %887 = vmatpush1.msra.mxu0 0.0
        %888 = vmatprep.subr.mxu0 0.0
        %889 = vmatpush1.msra.mxu0 0.0
        %890 = vmatprep.subr.mxu0 0.0
        %891 = vmatpush1.msra.mxu0 0.0
        %892 = vmatprep.subr.mxu0 0.0
        %893 = vmatpush1.msra.mxu0 0.0
        %894 = vmatprep.subr.mxu0 0.0
        %895 = vmatpush1.msra.mxu0 0.0
        %896 = vmatprep.subr.mxu0 0.0
        %897 = vmatpush1.msra.mxu0 0.0
        %898 = vmatprep.subr.mxu0 0.0
        %899 = vmatpush1.msra.mxu0 0.0
        %900 = vmatprep.subr.mxu0 0.0
        %901 = vmatpush1.msra.mxu0 0.0
        %902 = vmatprep.subr.mxu0 0.0
        %903 = vmatpush1.msra.mxu0 0.0
        %904 = vmatprep.subr.mxu0 0.0
        %905 = vmatpush1.msra.mxu0 0.0
        %906 = vmatprep.subr.mxu0 0.0
        %907 = vmatpush1.msra.mxu0 0.0
        %908 = vmatprep.subr.mxu0 0.0
        %909 = vmatpush1.msra.mxu0 0.0
        %910 = vmatprep.subr.mxu0 0.0
        %911 = vmatpush1.msra.mxu0 0.0
        %912 = vmatprep.subr.mxu0 0.0
        %913 = vmatpush1.msra.mxu0 0.0
        %914 = vmatprep.subr.mxu0 0.0
        %915 = vmatpush1.msra.mxu0 0.0
        %916 = vmatprep.subr.mxu0 0.0
        %917 = vmatpush1.msra.mxu0 0.0
        %918 = vmatprep.subr.mxu0 0.0
        %919 = vmatpush1.msra.mxu0 0.0
        %920 = vmatprep.subr.mxu0 0.0
        %921 = vmatpush1.msra.mxu0 0.0
        %922 = vmatprep.subr.mxu0 0.0
        %923 = vmatpush1.msra.mxu0 0.0
        %924 = vmatprep.subr.mxu0 0.0
        %925 = vmatpush1.msra.mxu0 0.0
        %926 = vmatprep.subr.mxu0 0.0
        %927 = vmatpush1.msra.mxu0 0.0
        %928 = vmatprep.subr.mxu0 0.0
        %929 = vmatpush1.msra.mxu0 0.0
        %930 = vmatprep.subr.mxu0 0.0
        %931 = vmatpush1.msra.mxu0 0.0
        %932 = vmatprep.subr.mxu0 0.0
        %933 = vmatpush1.msra.mxu0 0.0
        %934 = vmatprep.subr.mxu0 0.0
        %935 = vmatpush1.msra.mxu0 0.0
        %936 = vmatprep.subr.mxu0 0.0
        %937 = vmatpush1.msra.mxu0 0.0
        %938 = vmatprep.mubr.f32.mxu0 0.0
        %939 = vmatmul.mubr.f32.gmra.mrb[0].mxu0 %v872
        %v940 = vpop.f32.mrb[0].mxu0
        %v941 = vadd.f32 0.0, %v940
        %v942 = vpop.f32.mrb[0].mxu0
        %943 = vdwg.mxu0
        %s944 = scalar_lea.vmem %s3, 16
        %v945 = vld [vmem:[%s944] sm:$0xf]
        %946 = vrot.lane.b32.xlu0 %v276, 112
        %v947 = vpop.permute.xlu0 %946
        %v949 = vsel %vm280, %v945, 0
        %v951 = vsel %vm280, %v947, 0
        %953 = vmatprep.subr.mxu0 0.0
        %954 = vmatpush1.xpose.msra.mxu0 %v951
        %955 = vmatprep.subr.mxu0 0.0
        %956 = vmatpush1.xpose.msra.mxu0 0.0
        %957 = vmatprep.subr.mxu0 0.0
        %958 = vmatpush1.xpose.msra.mxu0 0.0
        %959 = vmatprep.subr.mxu0 0.0
        %960 = vmatpush1.xpose.msra.mxu0 0.0
        %961 = vmatprep.subr.mxu0 0.0
        %962 = vmatpush1.xpose.msra.mxu0 0.0
        %963 = vmatprep.subr.mxu0 0.0
        %964 = vmatpush1.xpose.msra.mxu0 0.0
        %965 = vmatprep.subr.mxu0 0.0
        %966 = vmatpush1.xpose.msra.mxu0 0.0
        %967 = vmatprep.subr.mxu0 0.0
        %968 = vmatpush1.xpose.msra.mxu0 0.0
        %969 = vmatprep.subr.mxu0 0.0
        %970 = vmatpush1.xpose.msra.mxu0 0.0
        %971 = vmatprep.subr.mxu0 0.0
        %972 = vmatpush1.xpose.msra.mxu0 0.0
        %973 = vmatprep.subr.mxu0 0.0
        %974 = vmatpush1.xpose.msra.mxu0 0.0
        %975 = vmatprep.subr.mxu0 0.0
        %976 = vmatpush1.xpose.msra.mxu0 0.0
        %977 = vmatprep.subr.mxu0 0.0
        %978 = vmatpush1.xpose.msra.mxu0 0.0
        %979 = vmatprep.subr.mxu0 0.0
        %980 = vmatpush1.xpose.msra.mxu0 0.0
        %981 = vmatprep.subr.mxu0 0.0
        %982 = vmatpush1.xpose.msra.mxu0 0.0
        %983 = vmatprep.subr.mxu0 0.0
        %984 = vmatpush1.xpose.msra.mxu0 0.0
        %985 = vmatprep.subr.mxu0 0.0
        %986 = vmatpush1.xpose.msra.mxu0 0.0
        %987 = vmatprep.subr.mxu0 0.0
        %988 = vmatpush1.xpose.msra.mxu0 0.0
        %989 = vmatprep.subr.mxu0 0.0
        %990 = vmatpush1.xpose.msra.mxu0 0.0
        %991 = vmatprep.subr.mxu0 0.0
        %992 = vmatpush1.xpose.msra.mxu0 0.0
        %993 = vmatprep.subr.mxu0 0.0
        %994 = vmatpush1.xpose.msra.mxu0 0.0
        %995 = vmatprep.subr.mxu0 0.0
        %996 = vmatpush1.xpose.msra.mxu0 0.0
        %997 = vmatprep.subr.mxu0 0.0
        %998 = vmatpush1.xpose.msra.mxu0 0.0
        %999 = vmatprep.subr.mxu0 0.0
        %1000 = vmatpush1.xpose.msra.mxu0 0.0
        %1001 = vmatprep.subr.mxu0 0.0
        %1002 = vmatpush1.xpose.msra.mxu0 0.0
        %1003 = vmatprep.subr.mxu0 0.0
        %1004 = vmatpush1.xpose.msra.mxu0 0.0
        %1005 = vmatprep.subr.mxu0 0.0
        %1006 = vmatpush1.xpose.msra.mxu0 0.0
        %1007 = vmatprep.subr.mxu0 0.0
        %1008 = vmatpush1.xpose.msra.mxu0 0.0
        %1009 = vmatprep.subr.mxu0 0.0
        %1010 = vmatpush1.xpose.msra.mxu0 0.0
        %1011 = vmatprep.subr.mxu0 0.0
        %1012 = vmatpush1.xpose.msra.mxu0 0.0
        %1013 = vmatprep.subr.mxu0 0.0
        %1014 = vmatpush1.xpose.msra.mxu0 0.0
        %1015 = vmatprep.subr.mxu0 0.0
        %1016 = vmatpush1.xpose.msra.mxu0 0.0
        %1017 = vmatprep.mubr.f32.mxu0 0.0
        %1018 = vmatmul.mubr.f32.gmra.mrb[0].mxu0 %v949
        %v1019 = vpop.f32.mrb[0].mxu0
        %v1020 = vadd.f32 0.0, %v1019
        %v1021 = vpop.f32.mrb[0].mxu0
        %1022 = vdwg.mxu0
        %v1023 = vsel %vm357, %v1020, -inf
        %1024 = vmax.xlane.f32.xlu0 %v1023
        %v1025 = vpop.xlane.xlu0 %1024
        %v1026 = vsub.f32 %v1020, %v1025
        %v1027 = vmul.f32 %v1026, 1.442695
        %v1028 = vpow.pop %v1027
        %v1029 = vsel %vm357, %v1028, 0.0
        %1030 = vadd.xlane.f32.xlu0 %v1029
        %v1031 = vpop.xlane.xlu0 %1030
        %v1032 = vrcp.pop %v1031
        %v1033 = vmul.f32 %v1028, %v1032
        %1034 = vrot.lane.b32.xlu0 %v276, 80
        %v1035 = vpop.permute.xlu0 %1034
        %v1038 = vsel %vm372, %v1033, 0
        %1040 = vmatprep.subr.mxu0 0.0
        %1041 = vmatpush1.msra.mxu0 %v1035
        %1042 = vmatprep.subr.mxu0 0.0
        %1043 = vmatpush1.msra.mxu0 0.0
        %1044 = vmatprep.subr.mxu0 0.0
        %1045 = vmatpush1.msra.mxu0 0.0
        %1046 = vmatprep.subr.mxu0 0.0
        %1047 = vmatpush1.msra.mxu0 0.0
        %1048 = vmatprep.subr.mxu0 0.0
        %1049 = vmatpush1.msra.mxu0 0.0
        %1050 = vmatprep.subr.mxu0 0.0
        %1051 = vmatpush1.msra.mxu0 0.0
        %1052 = vmatprep.subr.mxu0 0.0
        %1053 = vmatpush1.msra.mxu0 0.0
        %1054 = vmatprep.subr.mxu0 0.0
        %1055 = vmatpush1.msra.mxu0 0.0
        %1056 = vmatprep.subr.mxu0 0.0
        %1057 = vmatpush1.msra.mxu0 0.0
        %1058 = vmatprep.subr.mxu0 0.0
        %1059 = vmatpush1.msra.mxu0 0.0
        %1060 = vmatprep.subr.mxu0 0.0
        %1061 = vmatpush1.msra.mxu0 0.0
        %1062 = vmatprep.subr.mxu0 0.0
        %1063 = vmatpush1.msra.mxu0 0.0
        %1064 = vmatprep.subr.mxu0 0.0
        %1065 = vmatpush1.msra.mxu0 0.0
        %1066 = vmatprep.subr.mxu0 0.0
        %1067 = vmatpush1.msra.mxu0 0.0
        %1068 = vmatprep.subr.mxu0 0.0
        %1069 = vmatpush1.msra.mxu0 0.0
        %1070 = vmatprep.subr.mxu0 0.0
        %1071 = vmatpush1.msra.mxu0 0.0
        %1072 = vmatprep.subr.mxu0 0.0
        %1073 = vmatpush1.msra.mxu0 0.0
        %1074 = vmatprep.subr.mxu0 0.0
        %1075 = vmatpush1.msra.mxu0 0.0
        %1076 = vmatprep.subr.mxu0 0.0
        %1077 = vmatpush1.msra.mxu0 0.0
        %1078 = vmatprep.subr.mxu0 0.0
        %1079 = vmatpush1.msra.mxu0 0.0
        %1080 = vmatprep.subr.mxu0 0.0
        %1081 = vmatpush1.msra.mxu0 0.0
        %1082 = vmatprep.subr.mxu0 0.0
        %1083 = vmatpush1.msra.mxu0 0.0
        %1084 = vmatprep.subr.mxu0 0.0
        %1085 = vmatpush1.msra.mxu0 0.0
        %1086 = vmatprep.subr.mxu0 0.0
        %1087 = vmatpush1.msra.mxu0 0.0
        %1088 = vmatprep.subr.mxu0 0.0
        %1089 = vmatpush1.msra.mxu0 0.0
        %1090 = vmatprep.subr.mxu0 0.0
        %1091 = vmatpush1.msra.mxu0 0.0
        %1092 = vmatprep.subr.mxu0 0.0
        %1093 = vmatpush1.msra.mxu0 0.0
        %1094 = vmatprep.subr.mxu0 0.0
        %1095 = vmatpush1.msra.mxu0 0.0
        %1096 = vmatprep.subr.mxu0 0.0
        %1097 = vmatpush1.msra.mxu0 0.0
        %1098 = vmatprep.subr.mxu0 0.0
        %1099 = vmatpush1.msra.mxu0 0.0
        %1100 = vmatprep.subr.mxu0 0.0
        %1101 = vmatpush1.msra.mxu0 0.0
        %1102 = vmatprep.subr.mxu0 0.0
        %1103 = vmatpush1.msra.mxu0 0.0
        %1104 = vmatprep.mubr.f32.mxu0 0.0
        %1105 = vmatmul.mubr.f32.gmra.mrb[0].mxu0 %v1038
        %v1106 = vpop.f32.mrb[0].mxu0
        %v1107 = vadd.f32 0.0, %v1106
        %v1108 = vpop.f32.mrb[0].mxu0
        %1109 = vdwg.mxu0
        %s1110 = scalar_lea.vmem %s3, 20
        %v1111 = vld [vmem:[%s1110] sm:$0xf]
        %1112 = vrot.lane.b32.xlu0 %v276, 108
        %v1113 = vpop.permute.xlu0 %1112
        %v1115 = vsel %vm280, %v1111, 0
        %v1117 = vsel %vm280, %v1113, 0
        %1119 = vmatprep.subr.mxu0 0.0
        %1120 = vmatpush1.xpose.msra.mxu0 %v1117
        %1121 = vmatprep.subr.mxu0 0.0
        %1122 = vmatpush1.xpose.msra.mxu0 0.0
        %1123 = vmatprep.subr.mxu0 0.0
        %1124 = vmatpush1.xpose.msra.mxu0 0.0
        %1125 = vmatprep.subr.mxu0 0.0
        %1126 = vmatpush1.xpose.msra.mxu0 0.0
        %1127 = vmatprep.subr.mxu0 0.0
        %1128 = vmatpush1.xpose.msra.mxu0 0.0
        %1129 = vmatprep.subr.mxu0 0.0
        %1130 = vmatpush1.xpose.msra.mxu0 0.0
        %1131 = vmatprep.subr.mxu0 0.0
        %1132 = vmatpush1.xpose.msra.mxu0 0.0
        %1133 = vmatprep.subr.mxu0 0.0
        %1134 = vmatpush1.xpose.msra.mxu0 0.0
        %1135 = vmatprep.subr.mxu0 0.0
        %1136 = vmatpush1.xpose.msra.mxu0 0.0
        %1137 = vmatprep.subr.mxu0 0.0
        %1138 = vmatpush1.xpose.msra.mxu0 0.0
        %1139 = vmatprep.subr.mxu0 0.0
        %1140 = vmatpush1.xpose.msra.mxu0 0.0
        %1141 = vmatprep.subr.mxu0 0.0
        %1142 = vmatpush1.xpose.msra.mxu0 0.0
        %1143 = vmatprep.subr.mxu0 0.0
        %1144 = vmatpush1.xpose.msra.mxu0 0.0
        %1145 = vmatprep.subr.mxu0 0.0
        %1146 = vmatpush1.xpose.msra.mxu0 0.0
        %1147 = vmatprep.subr.mxu0 0.0
        %1148 = vmatpush1.xpose.msra.mxu0 0.0
        %1149 = vmatprep.subr.mxu0 0.0
        %1150 = vmatpush1.xpose.msra.mxu0 0.0
        %1151 = vmatprep.subr.mxu0 0.0
        %1152 = vmatpush1.xpose.msra.mxu0 0.0
        %1153 = vmatprep.subr.mxu0 0.0
        %1154 = vmatpush1.xpose.msra.mxu0 0.0
        %1155 = vmatprep.subr.mxu0 0.0
        %1156 = vmatpush1.xpose.msra.mxu0 0.0
        %1157 = vmatprep.subr.mxu0 0.0
        %1158 = vmatpush1.xpose.msra.mxu0 0.0
        %1159 = vmatprep.subr.mxu0 0.0
        %1160 = vmatpush1.xpose.msra.mxu0 0.0
        %1161 = vmatprep.subr.mxu0 0.0
        %1162 = vmatpush1.xpose.msra.mxu0 0.0
        %1163 = vmatprep.subr.mxu0 0.0
        %1164 = vmatpush1.xpose.msra.mxu0 0.0
        %1165 = vmatprep.subr.mxu0 0.0
        %1166 = vmatpush1.xpose.msra.mxu0 0.0
        %1167 = vmatprep.subr.mxu0 0.0
        %1168 = vmatpush1.xpose.msra.mxu0 0.0
        %1169 = vmatprep.subr.mxu0 0.0
        %1170 = vmatpush1.xpose.msra.mxu0 0.0
        %1171 = vmatprep.subr.mxu0 0.0
        %1172 = vmatpush1.xpose.msra.mxu0 0.0
        %1173 = vmatprep.subr.mxu0 0.0
        %1174 = vmatpush1.xpose.msra.mxu0 0.0
        %1175 = vmatprep.subr.mxu0 0.0
        %1176 = vmatpush1.xpose.msra.mxu0 0.0
        %1177 = vmatprep.subr.mxu0 0.0
        %1178 = vmatpush1.xpose.msra.mxu0 0.0
        %1179 = vmatprep.subr.mxu0 0.0
        %1180 = vmatpush1.xpose.msra.mxu0 0.0
        %1181 = vmatprep.subr.mxu0 0.0
        %1182 = vmatpush1.xpose.msra.mxu0 0.0
        %1183 = vmatprep.mubr.f32.mxu0 0.0
        %1184 = vmatmul.mubr.f32.gmra.mrb[0].mxu0 %v1115
        %v1185 = vpop.f32.mrb[0].mxu0
        %v1186 = vadd.f32 0.0, %v1185
        %v1187 = vpop.f32.mrb[0].mxu0
        %1188 = vdwg.mxu0
        %v1189 = vsel %vm357, %v1186, -inf
        %1190 = vmax.xlane.f32.xlu0 %v1189
        %v1191 = vpop.xlane.xlu0 %1190
        %v1192 = vsub.f32 %v1186, %v1191
        %v1193 = vmul.f32 %v1192, 1.442695
        %v1194 = vpow.pop %v1193
        %v1195 = vsel %vm357, %v1194, 0.0
        %1196 = vadd.xlane.f32.xlu0 %v1195
        %v1197 = vpop.xlane.xlu0 %1196
        %v1198 = vrcp.pop %v1197
        %v1199 = vmul.f32 %v1194, %v1198
        %1200 = vrot.lane.b32.xlu0 %v276, 76
        %v1201 = vpop.permute.xlu0 %1200
        %v1204 = vsel %vm372, %v1199, 0
        %1206 = vmatprep.subr.mxu0 0.0
        %1207 = vmatpush1.msra.mxu0 %v1201
        %1208 = vmatprep.subr.mxu0 0.0
        %1209 = vmatpush1.msra.mxu0 0.0
        %1210 = vmatprep.subr.mxu0 0.0
        %1211 = vmatpush1.msra.mxu0 0.0
        %1212 = vmatprep.subr.mxu0 0.0
        %1213 = vmatpush1.msra.mxu0 0.0
        %1214 = vmatprep.subr.mxu0 0.0
        %1215 = vmatpush1.msra.mxu0 0.0
        %1216 = vmatprep.subr.mxu0 0.0
        %1217 = vmatpush1.msra.mxu0 0.0
        %1218 = vmatprep.subr.mxu0 0.0
        %1219 = vmatpush1.msra.mxu0 0.0
        %1220 = vmatprep.subr.mxu0 0.0
        %1221 = vmatpush1.msra.mxu0 0.0
        %1222 = vmatprep.subr.mxu0 0.0
        %1223 = vmatpush1.msra.mxu0 0.0
        %1224 = vmatprep.subr.mxu0 0.0
        %1225 = vmatpush1.msra.mxu0 0.0
        %1226 = vmatprep.subr.mxu0 0.0
        %1227 = vmatpush1.msra.mxu0 0.0
        %1228 = vmatprep.subr.mxu0 0.0
        %1229 = vmatpush1.msra.mxu0 0.0
        %1230 = vmatprep.subr.mxu0 0.0
        %1231 = vmatpush1.msra.mxu0 0.0
        %1232 = vmatprep.subr.mxu0 0.0
        %1233 = vmatpush1.msra.mxu0 0.0
        %1234 = vmatprep.subr.mxu0 0.0
        %1235 = vmatpush1.msra.mxu0 0.0
        %1236 = vmatprep.subr.mxu0 0.0
        %1237 = vmatpush1.msra.mxu0 0.0
        %1238 = vmatprep.subr.mxu0 0.0
        %1239 = vmatpush1.msra.mxu0 0.0
        %1240 = vmatprep.subr.mxu0 0.0
        %1241 = vmatpush1.msra.mxu0 0.0
        %1242 = vmatprep.subr.mxu0 0.0
        %1243 = vmatpush1.msra.mxu0 0.0
        %1244 = vmatprep.subr.mxu0 0.0
        %1245 = vmatpush1.msra.mxu0 0.0
        %1246 = vmatprep.subr.mxu0 0.0
        %1247 = vmatpush1.msra.mxu0 0.0
        %1248 = vmatprep.subr.mxu0 0.0
        %1249 = vmatpush1.msra.mxu0 0.0
        %1250 = vmatprep.subr.mxu0 0.0
        %1251 = vmatpush1.msra.mxu0 0.0
        %1252 = vmatprep.subr.mxu0 0.0
        %1253 = vmatpush1.msra.mxu0 0.0
        %1254 = vmatprep.subr.mxu0 0.0
        %1255 = vmatpush1.msra.mxu0 0.0
        %1256 = vmatprep.subr.mxu0 0.0
        %1257 = vmatpush1.msra.mxu0 0.0
        %1258 = vmatprep.subr.mxu0 0.0
        %1259 = vmatpush1.msra.mxu0 0.0
        %1260 = vmatprep.subr.mxu0 0.0
        %1261 = vmatpush1.msra.mxu0 0.0
        %1262 = vmatprep.subr.mxu0 0.0
        %1263 = vmatpush1.msra.mxu0 0.0
        %1264 = vmatprep.subr.mxu0 0.0
        %1265 = vmatpush1.msra.mxu0 0.0
        %1266 = vmatprep.subr.mxu0 0.0
        %1267 = vmatpush1.msra.mxu0 0.0
        %1268 = vmatprep.subr.mxu0 0.0
        %1269 = vmatpush1.msra.mxu0 0.0
        %1270 = vmatprep.mubr.f32.mxu0 0.0
        %1271 = vmatmul.mubr.f32.gmra.mrb[0].mxu0 %v1204
        %v1272 = vpop.f32.mrb[0].mxu0
        %v1273 = vadd.f32 0.0, %v1272
        %v1274 = vpop.f32.mrb[0].mxu0
        %1275 = vdwg.mxu0
        %s1276 = scalar_lea.vmem %s3, 24
        %v1277 = vld [vmem:[%s1276] sm:$0xf]
        %1278 = vrot.lane.b32.xlu0 %v276, 104
        %v1279 = vpop.permute.xlu0 %1278
        %v1281 = vsel %vm280, %v1277, 0
        %v1283 = vsel %vm280, %v1279, 0
        %1285 = vmatprep.subr.mxu0 0.0
        %1286 = vmatpush1.xpose.msra.mxu0 %v1283
        %1287 = vmatprep.subr.mxu0 0.0
        %1288 = vmatpush1.xpose.msra.mxu0 0.0
        %1289 = vmatprep.subr.mxu0 0.0
        %1290 = vmatpush1.xpose.msra.mxu0 0.0
        %1291 = vmatprep.subr.mxu0 0.0
        %1292 = vmatpush1.xpose.msra.mxu0 0.0
        %1293 = vmatprep.subr.mxu0 0.0
        %1294 = vmatpush1.xpose.msra.mxu0 0.0
        %1295 = vmatprep.subr.mxu0 0.0
        %1296 = vmatpush1.xpose.msra.mxu0 0.0
        %1297 = vmatprep.subr.mxu0 0.0
        %1298 = vmatpush1.xpose.msra.mxu0 0.0
        %1299 = vmatprep.subr.mxu0 0.0
        %1300 = vmatpush1.xpose.msra.mxu0 0.0
        %1301 = vmatprep.subr.mxu0 0.0
        %1302 = vmatpush1.xpose.msra.mxu0 0.0
        %1303 = vmatprep.subr.mxu0 0.0
        %1304 = vmatpush1.xpose.msra.mxu0 0.0
        %1305 = vmatprep.subr.mxu0 0.0
        %1306 = vmatpush1.xpose.msra.mxu0 0.0
        %1307 = vmatprep.subr.mxu0 0.0
        %1308 = vmatpush1.xpose.msra.mxu0 0.0
        %1309 = vmatprep.subr.mxu0 0.0
        %1310 = vmatpush1.xpose.msra.mxu0 0.0
        %1311 = vmatprep.subr.mxu0 0.0
        %1312 = vmatpush1.xpose.msra.mxu0 0.0
        %1313 = vmatprep.subr.mxu0 0.0
        %1314 = vmatpush1.xpose.msra.mxu0 0.0
        %1315 = vmatprep.subr.mxu0 0.0
        %1316 = vmatpush1.xpose.msra.mxu0 0.0
        %1317 = vmatprep.subr.mxu0 0.0
        %1318 = vmatpush1.xpose.msra.mxu0 0.0
        %1319 = vmatprep.subr.mxu0 0.0
        %1320 = vmatpush1.xpose.msra.mxu0 0.0
        %1321 = vmatprep.subr.mxu0 0.0
        %1322 = vmatpush1.xpose.msra.mxu0 0.0
        %1323 = vmatprep.subr.mxu0 0.0
        %1324 = vmatpush1.xpose.msra.mxu0 0.0
        %1325 = vmatprep.subr.mxu0 0.0
        %1326 = vmatpush1.xpose.msra.mxu0 0.0
        %1327 = vmatprep.subr.mxu0 0.0
        %1328 = vmatpush1.xpose.msra.mxu0 0.0
        %1329 = vmatprep.subr.mxu0 0.0
        %1330 = vmatpush1.xpose.msra.mxu0 0.0
        %1331 = vmatprep.subr.mxu0 0.0
        %1332 = vmatpush1.xpose.msra.mxu0 0.0
        %1333 = vmatprep.subr.mxu0 0.0
        %1334 = vmatpush1.xpose.msra.mxu0 0.0
        %1335 = vmatprep.subr.mxu0 0.0
        %1336 = vmatpush1.xpose.msra.mxu0 0.0
        %1337 = vmatprep.subr.mxu0 0.0
        %1338 = vmatpush1.xpose.msra.mxu0 0.0
        %1339 = vmatprep.subr.mxu0 0.0
        %1340 = vmatpush1.xpose.msra.mxu0 0.0
        %1341 = vmatprep.subr.mxu0 0.0
        %1342 = vmatpush1.xpose.msra.mxu0 0.0
        %1343 = vmatprep.subr.mxu0 0.0
        %1344 = vmatpush1.xpose.msra.mxu0 0.0
        %1345 = vmatprep.subr.mxu0 0.0
        %1346 = vmatpush1.xpose.msra.mxu0 0.0
        %1347 = vmatprep.subr.mxu0 0.0
        %1348 = vmatpush1.xpose.msra.mxu0 0.0
        %1349 = vmatprep.mubr.f32.mxu0 0.0
        %1350 = vmatmul.mubr.f32.gmra.mrb[0].mxu0 %v1281
        %v1351 = vpop.f32.mrb[0].mxu0
        %v1352 = vadd.f32 0.0, %v1351
        %v1353 = vpop.f32.mrb[0].mxu0
        %1354 = vdwg.mxu0
        %v1355 = vsel %vm357, %v1352, -inf
        %1356 = vmax.xlane.f32.xlu0 %v1355
        %v1357 = vpop.xlane.xlu0 %1356
        %v1358 = vsub.f32 %v1352, %v1357
        %v1359 = vmul.f32 %v1358, 1.442695
        %v1360 = vpow.pop %v1359
        %v1361 = vsel %vm357, %v1360, 0.0
        %1362 = vadd.xlane.f32.xlu0 %v1361
        %v1363 = vpop.xlane.xlu0 %1362
        %v1364 = vrcp.pop %v1363
        %v1365 = vmul.f32 %v1360, %v1364
        %1366 = vrot.lane.b32.xlu0 %v276, 72
        %v1367 = vpop.permute.xlu0 %1366
        %v1370 = vsel %vm372, %v1365, 0
        %1372 = vmatprep.subr.mxu0 0.0
        %1373 = vmatpush1.msra.mxu0 %v1367
        %1374 = vmatprep.subr.mxu0 0.0
        %1375 = vmatpush1.msra.mxu0 0.0
        %1376 = vmatprep.subr.mxu0 0.0
        %1377 = vmatpush1.msra.mxu0 0.0
        %1378 = vmatprep.subr.mxu0 0.0
        %1379 = vmatpush1.msra.mxu0 0.0
        %1380 = vmatprep.subr.mxu0 0.0
        %1381 = vmatpush1.msra.mxu0 0.0
        %1382 = vmatprep.subr.mxu0 0.0
        %1383 = vmatpush1.msra.mxu0 0.0
        %1384 = vmatprep.subr.mxu0 0.0
        %1385 = vmatpush1.msra.mxu0 0.0
        %1386 = vmatprep.subr.mxu0 0.0
        %1387 = vmatpush1.msra.mxu0 0.0
        %1388 = vmatprep.subr.mxu0 0.0
        %1389 = vmatpush1.msra.mxu0 0.0
        %1390 = vmatprep.subr.mxu0 0.0
        %1391 = vmatpush1.msra.mxu0 0.0
        %1392 = vmatprep.subr.mxu0 0.0
        %1393 = vmatpush1.msra.mxu0 0.0
        %1394 = vmatprep.subr.mxu0 0.0
        %1395 = vmatpush1.msra.mxu0 0.0
        %1396 = vmatprep.subr.mxu0 0.0
        %1397 = vmatpush1.msra.mxu0 0.0
        %1398 = vmatprep.subr.mxu0 0.0
        %1399 = vmatpush1.msra.mxu0 0.0
        %1400 = vmatprep.subr.mxu0 0.0
        %1401 = vmatpush1.msra.mxu0 0.0
        %1402 = vmatprep.subr.mxu0 0.0
        %1403 = vmatpush1.msra.mxu0 0.0
        %1404 = vmatprep.subr.mxu0 0.0
        %1405 = vmatpush1.msra.mxu0 0.0
        %1406 = vmatprep.subr.mxu0 0.0
        %1407 = vmatpush1.msra.mxu0 0.0
        %1408 = vmatprep.subr.mxu0 0.0
        %1409 = vmatpush1.msra.mxu0 0.0
        %1410 = vmatprep.subr.mxu0 0.0
        %1411 = vmatpush1.msra.mxu0 0.0
        %1412 = vmatprep.subr.mxu0 0.0
        %1413 = vmatpush1.msra.mxu0 0.0
        %1414 = vmatprep.subr.mxu0 0.0
        %1415 = vmatpush1.msra.mxu0 0.0
        %1416 = vmatprep.subr.mxu0 0.0
        %1417 = vmatpush1.msra.mxu0 0.0
        %1418 = vmatprep.subr.mxu0 0.0
        %1419 = vmatpush1.msra.mxu0 0.0
        %1420 = vmatprep.subr.mxu0 0.0
        %1421 = vmatpush1.msra.mxu0 0.0
        %1422 = vmatprep.subr.mxu0 0.0
        %1423 = vmatpush1.msra.mxu0 0.0
        %1424 = vmatprep.subr.mxu0 0.0
        %1425 = vmatpush1.msra.mxu0 0.0
        %1426 = vmatprep.subr.mxu0 0.0
        %1427 = vmatpush1.msra.mxu0 0.0
        %1428 = vmatprep.subr.mxu0 0.0
        %1429 = vmatpush1.msra.mxu0 0.0
        %1430 = vmatprep.subr.mxu0 0.0
        %1431 = vmatpush1.msra.mxu0 0.0
        %1432 = vmatprep.subr.mxu0 0.0
        %1433 = vmatpush1.msra.mxu0 0.0
        %1434 = vmatprep.subr.mxu0 0.0
        %1435 = vmatpush1.msra.mxu0 0.0
        %1436 = vmatprep.mubr.f32.mxu0 0.0
        %1437 = vmatmul.mubr.f32.gmra.mrb[0].mxu0 %v1370
        %v1438 = vpop.f32.mrb[0].mxu0
        %v1439 = vadd.f32 0.0, %v1438
        %v1440 = vpop.f32.mrb[0].mxu0
        %1441 = vdwg.mxu0
        %s1442 = scalar_lea.vmem %s3, 28
        %v1443 = vld [vmem:[%s1442] sm:$0xf]
        %1444 = vrot.lane.b32.xlu0 %v276, 100
        %v1445 = vpop.permute.xlu0 %1444
        %v1447 = vsel %vm280, %v1443, 0
        %v1449 = vsel %vm280, %v1445, 0
        %1451 = vmatprep.subr.mxu0 0.0
        %1452 = vmatpush1.xpose.msra.mxu0 %v1449
        %1453 = vmatprep.subr.mxu0 0.0
        %1454 = vmatpush1.xpose.msra.mxu0 0.0
        %1455 = vmatprep.subr.mxu0 0.0
        %1456 = vmatpush1.xpose.msra.mxu0 0.0
        %1457 = vmatprep.subr.mxu0 0.0
        %1458 = vmatpush1.xpose.msra.mxu0 0.0
        %1459 = vmatprep.subr.mxu0 0.0
        %1460 = vmatpush1.xpose.msra.mxu0 0.0
        %1461 = vmatprep.subr.mxu0 0.0
        %1462 = vmatpush1.xpose.msra.mxu0 0.0
        %1463 = vmatprep.subr.mxu0 0.0
        %1464 = vmatpush1.xpose.msra.mxu0 0.0
        %1465 = vmatprep.subr.mxu0 0.0
        %1466 = vmatpush1.xpose.msra.mxu0 0.0
        %1467 = vmatprep.subr.mxu0 0.0
        %1468 = vmatpush1.xpose.msra.mxu0 0.0
        %1469 = vmatprep.subr.mxu0 0.0
        %1470 = vmatpush1.xpose.msra.mxu0 0.0
        %1471 = vmatprep.subr.mxu0 0.0
        %1472 = vmatpush1.xpose.msra.mxu0 0.0
        %1473 = vmatprep.subr.mxu0 0.0
        %1474 = vmatpush1.xpose.msra.mxu0 0.0
        %1475 = vmatprep.subr.mxu0 0.0
        %1476 = vmatpush1.xpose.msra.mxu0 0.0
        %1477 = vmatprep.subr.mxu0 0.0
        %1478 = vmatpush1.xpose.msra.mxu0 0.0
        %1479 = vmatprep.subr.mxu0 0.0
        %1480 = vmatpush1.xpose.msra.mxu0 0.0
        %1481 = vmatprep.subr.mxu0 0.0
        %1482 = vmatpush1.xpose.msra.mxu0 0.0
        %1483 = vmatprep.subr.mxu0 0.0
        %1484 = vmatpush1.xpose.msra.mxu0 0.0
        %1485 = vmatprep.subr.mxu0 0.0
        %1486 = vmatpush1.xpose.msra.mxu0 0.0
        %1487 = vmatprep.subr.mxu0 0.0
        %1488 = vmatpush1.xpose.msra.mxu0 0.0
        %1489 = vmatprep.subr.mxu0 0.0
        %1490 = vmatpush1.xpose.msra.mxu0 0.0
        %1491 = vmatprep.subr.mxu0 0.0
        %1492 = vmatpush1.xpose.msra.mxu0 0.0
        %1493 = vmatprep.subr.mxu0 0.0
        %1494 = vmatpush1.xpose.msra.mxu0 0.0
        %1495 = vmatprep.subr.mxu0 0.0
        %1496 = vmatpush1.xpose.msra.mxu0 0.0
        %1497 = vmatprep.subr.mxu0 0.0
        %1498 = vmatpush1.xpose.msra.mxu0 0.0
        %1499 = vmatprep.subr.mxu0 0.0
        %1500 = vmatpush1.xpose.msra.mxu0 0.0
        %1501 = vmatprep.subr.mxu0 0.0
        %1502 = vmatpush1.xpose.msra.mxu0 0.0
        %1503 = vmatprep.subr.mxu0 0.0
        %1504 = vmatpush1.xpose.msra.mxu0 0.0
        %1505 = vmatprep.subr.mxu0 0.0
        %1506 = vmatpush1.xpose.msra.mxu0 0.0
        %1507 = vmatprep.subr.mxu0 0.0
        %1508 = vmatpush1.xpose.msra.mxu0 0.0
        %1509 = vmatprep.subr.mxu0 0.0
        %1510 = vmatpush1.xpose.msra.mxu0 0.0
        %1511 = vmatprep.subr.mxu0 0.0
        %1512 = vmatpush1.xpose.msra.mxu0 0.0
        %1513 = vmatprep.subr.mxu0 0.0
        %1514 = vmatpush1.xpose.msra.mxu0 0.0
        %1515 = vmatprep.mubr.f32.mxu0 0.0
        %1516 = vmatmul.mubr.f32.gmra.mrb[0].mxu0 %v1447
        %v1517 = vpop.f32.mrb[0].mxu0
        %v1518 = vadd.f32 0.0, %v1517
        %v1519 = vpop.f32.mrb[0].mxu0
        %1520 = vdwg.mxu0
        %v1521 = vsel %vm357, %v1518, -inf
        %1522 = vmax.xlane.f32.xlu0 %v1521
        %v1523 = vpop.xlane.xlu0 %1522
        %v1524 = vsub.f32 %v1518, %v1523
        %v1525 = vmul.f32 %v1524, 1.442695
        %v1526 = vpow.pop %v1525
        %v1527 = vsel %vm357, %v1526, 0.0
        %1528 = vadd.xlane.f32.xlu0 %v1527
        %v1529 = vpop.xlane.xlu0 %1528
        %v1530 = vrcp.pop %v1529
        %v1531 = vmul.f32 %v1526, %v1530
        %1532 = vrot.lane.b32.xlu0 %v276, 68
        %v1533 = vpop.permute.xlu0 %1532
        %v1536 = vsel %vm372, %v1531, 0
        %1538 = vmatprep.subr.mxu0 0.0
        %1539 = vmatpush1.msra.mxu0 %v1533
        %1540 = vmatprep.subr.mxu0 0.0
        %1541 = vmatpush1.msra.mxu0 0.0
        %1542 = vmatprep.subr.mxu0 0.0
        %1543 = vmatpush1.msra.mxu0 0.0
        %1544 = vmatprep.subr.mxu0 0.0
        %1545 = vmatpush1.msra.mxu0 0.0
        %1546 = vmatprep.subr.mxu0 0.0
        %1547 = vmatpush1.msra.mxu0 0.0
        %1548 = vmatprep.subr.mxu0 0.0
        %1549 = vmatpush1.msra.mxu0 0.0
        %1550 = vmatprep.subr.mxu0 0.0
        %1551 = vmatpush1.msra.mxu0 0.0
        %1552 = vmatprep.subr.mxu0 0.0
        %1553 = vmatpush1.msra.mxu0 0.0
        %1554 = vmatprep.subr.mxu0 0.0
        %1555 = vmatpush1.msra.mxu0 0.0
        %1556 = vmatprep.subr.mxu0 0.0
        %1557 = vmatpush1.msra.mxu0 0.0
        %1558 = vmatprep.subr.mxu0 0.0
        %1559 = vmatpush1.msra.mxu0 0.0
        %1560 = vmatprep.subr.mxu0 0.0
        %1561 = vmatpush1.msra.mxu0 0.0
        %1562 = vmatprep.subr.mxu0 0.0
        %1563 = vmatpush1.msra.mxu0 0.0
        %1564 = vmatprep.subr.mxu0 0.0
        %1565 = vmatpush1.msra.mxu0 0.0
        %1566 = vmatprep.subr.mxu0 0.0
        %1567 = vmatpush1.msra.mxu0 0.0
        %1568 = vmatprep.subr.mxu0 0.0
        %1569 = vmatpush1.msra.mxu0 0.0
        %1570 = vmatprep.subr.mxu0 0.0
        %1571 = vmatpush1.msra.mxu0 0.0
        %1572 = vmatprep.subr.mxu0 0.0
        %1573 = vmatpush1.msra.mxu0 0.0
        %1574 = vmatprep.subr.mxu0 0.0
        %1575 = vmatpush1.msra.mxu0 0.0
        %1576 = vmatprep.subr.mxu0 0.0
        %1577 = vmatpush1.msra.mxu0 0.0
        %1578 = vmatprep.subr.mxu0 0.0
        %1579 = vmatpush1.msra.mxu0 0.0
        %1580 = vmatprep.subr.mxu0 0.0
        %1581 = vmatpush1.msra.mxu0 0.0
        %1582 = vmatprep.subr.mxu0 0.0
        %1583 = vmatpush1.msra.mxu0 0.0
        %1584 = vmatprep.subr.mxu0 0.0
        %1585 = vmatpush1.msra.mxu0 0.0
        %1586 = vmatprep.subr.mxu0 0.0
        %1587 = vmatpush1.msra.mxu0 0.0
        %1588 = vmatprep.subr.mxu0 0.0
        %1589 = vmatpush1.msra.mxu0 0.0
        %1590 = vmatprep.subr.mxu0 0.0
        %1591 = vmatpush1.msra.mxu0 0.0
        %1592 = vmatprep.subr.mxu0 0.0
        %1593 = vmatpush1.msra.mxu0 0.0
        %1594 = vmatprep.subr.mxu0 0.0
        %1595 = vmatpush1.msra.mxu0 0.0
        %1596 = vmatprep.subr.mxu0 0.0
        %1597 = vmatpush1.msra.mxu0 0.0
        %1598 = vmatprep.subr.mxu0 0.0
        %1599 = vmatpush1.msra.mxu0 0.0
        %1600 = vmatprep.subr.mxu0 0.0
        %1601 = vmatpush1.msra.mxu0 0.0
        %1602 = vmatprep.mubr.f32.mxu0 0.0
        %1603 = vmatmul.mubr.f32.gmra.mrb[0].mxu0 %v1536
        %v1604 = vpop.f32.mrb[0].mxu0
        %v1605 = vadd.f32 0.0, %v1604
        %v1606 = vpop.f32.mrb[0].mxu0
        %1607 = vdwg.mxu0
        %1609 = vrot.lane.b32.xlu0 %v609, 4
        %v1610 = vpop.permute.xlu0 %1609
        %1613 = vrot.lane.b32.xlu0 %v775, 8
        %v1614 = vpop.permute.xlu0 %1613
        %1617 = vrot.lane.b32.xlu0 %v941, 12
        %v1618 = vpop.permute.xlu0 %1617
        %1621 = vrot.lane.b32.xlu0 %v1107, 16
        %v1622 = vpop.permute.xlu0 %1621
        %1625 = vrot.lane.b32.xlu0 %v1273, 20
        %v1626 = vpop.permute.xlu0 %1625
        %1629 = vrot.lane.b32.xlu0 %v1439, 24
        %v1630 = vpop.permute.xlu0 %1629
        %1633 = vrot.lane.b32.xlu0 %v1605, 28
        %v1634 = vpop.permute.xlu0 %1633
        %v1636 = vsel %vm280, %v443, %v1610
        %v1637 = vsel %vm372, %v1636, %v1614
        %vm1638 = vcmask 97280
        %v1639 = vsel %vm1638, %v1637, %v1618
        %vm1640 = vcmask 130048
        %v1641 = vsel %vm1640, %v1639, %v1622
        %vm1642 = vcmask 162816
        %v1643 = vsel %vm1642, %v1641, %v1626
        %vm1644 = vcmask 195584
        %v1645 = vsel %vm1644, %v1643, %v1630
        %vm1646 = vcmask 228352
        %v1647 = vsel %vm1646, %v1645, %v1634
        %vm1648 = vcmask 257024
        %1649 = vst.msk [vmem:[%s188] sm:$0xf] %vm1648, %v1647
        %s1650 = sand.u32 %s115, 1
        %s1651 = scalar_lea.sflag [#allocation3], %s1650
        %s1652 = sand.u32 %s115, 1
        %s1653 = smul.addr %s1652, 4
        %s1654 = scalar_lea.vmem [#allocation2], %s1653
        // Predicated region
        $region37: #{tpu_custom_call.1} parent=35 // pred_check
          %p1655 = pneg %p125
        $region38: #{tpu_custom_call.1} parent=35 // pred_check_branch
          %1657 = sbr.rel (%p1655) target = $region40
        $region39: #{tpu_custom_call.1} parent=35 // pred_region
          %s1659 = ssub.s32 64, 64
          %1660 = vsyncadd %s1651, %s1659
          %s1661 = smul.addr %s18, 64
          %s1662 = scalar_lea.hbm %s4, %s1661
          %s1664 = sshll.u32 %s1654, 4
          %s1665 = int_to_ptr.vmem [resolvable:$true] %s1664
          %1667 = dma.vmem_to_hbm [thread:$0]  %s1665, 64, %s1662, %s1651
        $region40: #{tpu_custom_call.1} parent=35 // pred_fallthru
          _
      $region36: #{tpu_custom_call.1} parent=5 // pred_fallthru
        _
      %p1668 = scmp.le.s32.totalorder 2, %s13
      // Predicated region
      $region41: #{tpu_custom_call.1} parent=5 // pred_check
        %p1669 = pneg %p1668
      $region42: #{tpu_custom_call.1} parent=5 // pred_check_branch
        %1671 = sbr.rel (%p1669) target = $region44
      $region43: #{tpu_custom_call.1} parent=5 // pred_region
        %s1672 = ssub.s32 %s13, 2
        // Predicated region
        $region45: #{tpu_custom_call.1} parent=43 // pred_check
          %p1673 = pneg %p131
        $region46: #{tpu_custom_call.1} parent=43 // pred_check_branch
          %1675 = sbr.rel (%p1673) target = $region48
        $region47: #{tpu_custom_call.1} parent=43 // pred_region
          %s1676 = sand.u32 %s116, 1
          %s1677 = scalar_lea.sflag [#allocation3], %s1676
          %s1678 = sand.u32 %s116, 1
          %s1679 = smul.addr %s1678, 4
          %s1680 = scalar_lea.vmem [#allocation2], %s1679
          %1681 = dma.done %s1677, 64
        $region48: #{tpu_custom_call.1} parent=43 // pred_fallthru
          _
      $region44: #{tpu_custom_call.1} parent=5 // pred_fallthru
        _
    $region6: #{tpu_custom_call.1} parent=1 // loop_footer
      %s17 = sadd.s32 1, %s13
    $region7: #{tpu_custom_call.1} parent=1 // loop_footer_branch
      %12 = sbr.rel target = $region3
    $region8: #{tpu_custom_call.1} parent=1 // loop_exit
      _
    %1682 = vsyncpa [#allocation3], 1
    %s1683 = scalar_lea.sflag [#allocation3], 1
    %1684 = vsyncpa %s1683, 1

</llo_original>
